<compile_context>
chip_gen: v7x
topology: tpu7x:2x2x1
jax: 0.10.0
libtpu: 0.0.40
codegen_flags: <defaults>
</compile_context>

<pallas_src>
import jax
import jax.numpy as jnp
from jax.experimental import pallas as pl
from jax.experimental.pallas import tpu as pltpu

N_IN, N_HID, N_NODES = 95, 280, 437          # logical sizes from the PyTorch module
N_IN_P, N_HID_P, N_OUT_P = 128, 384, 512     # lane-padded (multiples of 128)


def _round_up(n, m):
    return ((n + m - 1) // m) * m


def _choose_tile(batch):
    """Pick (tm, b_pad): tm multiple of 16, >=2 grid steps for non-tiny B,
    tile capped at 1024, last-tile padding minimized."""
    b16 = _round_up(batch, 16)               # bf16 packs 16 sublanes per vreg
    if b16 <= 32:
        return b16, b16                       # tiny batch: one tile is cheapest
    target = min(1024, _round_up(pl.cdiv(b16, 2), 16))
    nsteps = max(2, pl.cdiv(b16, target))     # >=2 steps -> both v7x TCs used
    tm = _round_up(pl.cdiv(b16, nsteps), 16)  # near-even split -> minimal padding
    b_pad = _round_up(b16, tm)
    return tm, b_pad


# ---------------------------------------------------------------------------
# Kernel: one batch-tile of the full decoder forward.
# ---------------------------------------------------------------------------
def decoder_kernel(x_ref, w1_ref, b1_ref, w2_ref, b2_ref, a_ref, bg_ref, out_ref):
    # Linear(95 -> 280) + Tanh   (dropout = identity in eval mode)
    h1 = jnp.tanh(
        jnp.dot(x_ref[...], w1_ref[...], preferred_element_type=jnp.float32)
        + b1_ref[...]
    )
    # Linear(280 -> 437) + Tanh  (dropout = identity in eval mode)
    h2 = jnp.tanh(
        jnp.dot(h1.astype(jnp.bfloat16), w2_ref[...],
                preferred_element_type=jnp.float32)
        + b2_ref[...]
    )
    # GCNConv(1 -> 1): a_ref holds (w_gcn * A_hat)^T (padded, bf16), so
    # out[b, i] = sum_j w_gcn * A_hat[i, j] * h2[b, j] + b_gcn.
    out_ref[...] = (
        jnp.dot(h2.astype(jnp.bfloat16), a_ref[...],
                preferred_element_type=jnp.float32)
        + bg_ref[...]
    )


# ---------------------------------------------------------------------------
# One-time host-side preparation (adjacency, padding, bf16 casts).
# ---------------------------------------------------------------------------
def build_gcn_norm_adjacency(edge_index, num_nodes):
    """Dense D^{-1/2} (A + I) D^{-1/2}, matching torch_geometric gcn_norm defaults.

    Existing self-loops in edge_index are dropped before adding the identity so
    self-loops are never double counted (add_remaining_self_loops semantics).
    """
    src, dst = edge_index
    w = jnp.where(src == dst, 0.0, 1.0)
    adj = jnp.zeros((num_nodes, num_nodes), jnp.float32).at[dst, src].add(w)
    adj = adj + jnp.eye(num_nodes, dtype=jnp.float32)
    deg = jnp.sum(adj, axis=1)
    dinv = jnp.where(deg > 0, 1.0 / jnp.sqrt(deg), 0.0)
    return dinv[:, None] * adj * dinv[None, :]


def make_params(key):
    """Deterministic init mimicking nn.Linear / GCNConv parameter shapes."""
    k1, k2, k3, k4, k5, k6 = jax.random.split(key, 6)

    def lin_init(kw, kb, fan_in, fan_out):
        bound = 1.0 / jnp.sqrt(fan_in)
        w = jax.random.uniform(kw, (fan_in, fan_out), jnp.float32, -bound, bound)
        b = jax.random.uniform(kb, (1, fan_out), jnp.float32, -bound, bound)
        return w, b

    w1, b1 = lin_init(k1, k2, N_IN, N_HID)      # Linear(95, 280), stored transposed
    w2, b2 = lin_init(k3, k4, N_HID, N_NODES)   # Linear(280, 437), stored transposed
    w_gcn = jax.random.uniform(k5, (1,), jnp.float32, -1.0, 1.0)  # GCNConv(1,1) weight
    b_gcn = jax.random.uniform(k6, (1,), jnp.float32, -1.0, 1.0)  # GCNConv(1,1) bias
    return w1, b1, w2, b2, w_gcn, b_gcn


def prepare_decoder_constants(params, edge_index):
    """Pad to lane multiples, cast matmul operands to bf16, fold w_gcn into A_hat^T,
    and materialize b_gcn as a lane-dense f32 bias row."""
    w1, b1, w2, b2, w_gcn, b_gcn = params
    a_hat = build_gcn_norm_adjacency(edge_index, N_NODES)
    a_t_scaled = (w_gcn[0] * a_hat).T   # one-time prep; kernel never transposes/scales

    w1_p = (jnp.zeros((N_IN_P, N_HID_P), jnp.float32)
            .at[:N_IN, :N_HID].set(w1).astype(jnp.bfloat16))
    w2_p = (jnp.zeros((N_HID_P, N_OUT_P), jnp.float32)
            .at[:N_HID, :N_NODES].set(w2).astype(jnp.bfloat16))
    a_p = (jnp.zeros((N_OUT_P, N_OUT_P), jnp.float32)
           .at[:N_NODES, :N_NODES].set(a_t_scaled).astype(jnp.bfloat16))
    b1_p = jnp.zeros((1, N_HID_P), jnp.float32).at[:, :N_HID].set(b1)
    b2_p = jnp.zeros((1, N_OUT_P), jnp.float32).at[:, :N_NODES].set(b2)
    bg_p = jnp.full((1, N_OUT_P), b_gcn[0], jnp.float32)   # plain VMEM bias row
    return w1_p, b1_p, w2_p, b2_p, a_p, bg_p


# ---------------------------------------------------------------------------
# Forward wrapper: batch-tiled pallas_call with resident weights.
# ---------------------------------------------------------------------------
@jax.jit
def decoder_forward(x, consts):
    """x: (B, 1, 95) float32 -> dict with x_output: (B, 1, 437) float32."""
    w1_p, b1_p, w2_p, b2_p, a_p, bg_p = consts
    B = x.shape[0]

    tm, b_pad = _choose_tile(B)

    # Single fused pad of the bf16-cast input (no zeros + update-slice pass).
    xb = x.reshape(B, N_IN).astype(jnp.bfloat16)
    x2d = jnp.pad(xb, ((0, b_pad - B), (0, N_IN_P - N_IN)))

    out_p = pl.pallas_call(
        decoder_kernel,
        out_shape=jax.ShapeDtypeStruct((b_pad, N_OUT_P), jnp.float32),
        grid=(b_pad // tm,),
        in_specs=[
            pl.BlockSpec((tm, N_IN_P), lambda i: (i, 0)),        # x tile (streamed)
            pl.BlockSpec((N_IN_P, N_HID_P), lambda i: (0, 0)),   # W1 (resident)
            pl.BlockSpec((1, N_HID_P), lambda i: (0, 0)),        # b1 (resident)
            pl.BlockSpec((N_HID_P, N_OUT_P), lambda i: (0, 0)),  # W2 (resident)
            pl.BlockSpec((1, N_OUT_P), lambda i: (0, 0)),        # b2 (resident)
            pl.BlockSpec((N_OUT_P, N_OUT_P), lambda i: (0, 0)),  # (w_gcn*A_hat)^T
            pl.BlockSpec((1, N_OUT_P), lambda i: (0, 0)),        # b_gcn bias row
        ],
        out_specs=pl.BlockSpec((tm, N_OUT_P), lambda i: (i, 0)),
        compiler_params=pltpu.CompilerParams(
            dimension_semantics=("parallel",)),
    )(x2d, w1_p, b1_p, w2_p, b2_p, a_p, bg_p)

    out = out_p[:B, :N_NODES].reshape(B, 1, N_NODES)
    return {"x_input": x, "x_output": out}


# ---------------------------------------------------------------------------
# Pure-JAX reference with the same bf16-operand / f32-accumulation numerics.
# ---------------------------------------------------------------------------
def reference_forward(x, params, edge_index):
    w1, b1, w2, b2, w_gcn, b_gcn = params
    a_hat = build_gcn_norm_adjacency(edge_index, N_NODES)
    a_t = (w_gcn[0] * a_hat).T.astype(jnp.bfloat16)
    B = x.shape[0]
    xb = x.reshape(B, N_IN).astype(jnp.bfloat16)
    h1 = jnp.tanh(jnp.dot(xb, w1.astype(jnp.bfloat16),
                          preferred_element_type=jnp.float32) + b1)
    h2 = jnp.tanh(jnp.dot(h1.astype(jnp.bfloat16), w2.astype(jnp.bfloat16),
                          preferred_element_type=jnp.float32) + b2)
    out = jnp.dot(h2.astype(jnp.bfloat16), a_t,
                  preferred_element_type=jnp.float32) + b_gcn[0]
    return out.reshape(B, 1, N_NODES)


if __name__ == "__main__":
    key = jax.random.PRNGKey(0)
    k_x, k_p = jax.random.split(key)

    # Deterministic synthetic edge_index: undirected ring over 437 nodes.
    nodes = jnp.arange(N_NODES, dtype=jnp.int32)
    nxt = (nodes + 1) % N_NODES
    edge_index = jnp.stack(
        [jnp.concatenate([nodes, nxt]), jnp.concatenate([nxt, nodes])], axis=0
    )

    params = make_params(k_p)
    consts = prepare_decoder_constants(params, edge_index)

    x = jax.random.normal(k_x, (2, 1, N_IN), jnp.float32)  # (B=2, seq=1, 95)

    out = decoder_forward(x, consts)
    jax.block_until_ready(out["x_output"])

    ref = reference_forward(x, params, edge_index)
    assert out["x_output"].shape == (2, 1, N_NODES)
    assert jnp.allclose(out["x_output"], ref, atol=1e-2, rtol=1e-2)

    print("KERNEL_OK")
</pallas_src>

<mosaic_0001>
module attributes {stable_mosaic.version = 11 : i64} {
  func.func @decoder_kernel(%arg0: i32, %arg1: memref<16x128xbf16, #tpu.memory_space<vmem>>, %arg2: memref<128x384xbf16, #tpu.memory_space<vmem>>, %arg3: memref<1x384xf32, #tpu.memory_space<vmem>>, %arg4: memref<384x512xbf16, #tpu.memory_space<vmem>>, %arg5: memref<1x512xf32, #tpu.memory_space<vmem>>, %arg6: memref<512x512xbf16, #tpu.memory_space<vmem>>, %arg7: memref<1x512xf32, #tpu.memory_space<vmem>>, %arg8: memref<16x512xf32, #tpu.memory_space<vmem>>) attributes {dimension_semantics = [#tpu.dimension_semantics<parallel>], iteration_bounds = array<i64: 1>, scalar_prefetch = 0 : i64, scratch_operands = 0 : i64, tpu.core_type = #tpu.core_type<tc>, window_params = [{transform_indices = @transform_0, window_bounds = array<i64: 16, 128>}, {pipeline_mode = #tpu.pipeline_mode<synchronous>, transform_indices = @transform_1, window_bounds = array<i64: 128, 384>}, {pipeline_mode = #tpu.pipeline_mode<synchronous>, transform_indices = @transform_2, window_bounds = array<i64: 1, 384>}, {pipeline_mode = #tpu.pipeline_mode<synchronous>, transform_indices = @transform_3, window_bounds = array<i64: 384, 512>}, {pipeline_mode = #tpu.pipeline_mode<synchronous>, transform_indices = @transform_4, window_bounds = array<i64: 1, 512>}, {pipeline_mode = #tpu.pipeline_mode<synchronous>, transform_indices = @transform_5, window_bounds = array<i64: 512, 512>}, {pipeline_mode = #tpu.pipeline_mode<synchronous>, transform_indices = @transform_6, window_bounds = array<i64: 1, 512>}, {transform_indices = @transform_7, window_bounds = array<i64: 16, 512>}]} {
    %c0 = arith.constant 0 : index
    %c0_0 = arith.constant 0 : index
    %0 = vector.load %arg1[%c0, %c0_0] : memref<16x128xbf16, #tpu.memory_space<vmem>>, vector<16x128xbf16>
    %c0_1 = arith.constant 0 : index
    %c0_2 = arith.constant 0 : index
    %1 = vector.load %arg2[%c0_1, %c0_2] : memref<128x384xbf16, #tpu.memory_space<vmem>>, vector<128x384xbf16>
    %cst = arith.constant dense<0.000000e+00> : vector<16x384xf32>
    %2 = tpu.matmul %0, %1, %cst {dimension_numbers = #tpu.dot_dimension_numbers<[1], [0], [0], [1], [0, 0, 1, 1], [], []>} : vector<16x128xbf16>, vector<128x384xbf16>, vector<16x384xf32> -> vector<16x384xf32>
    %c0_3 = arith.constant 0 : index
    %c0_4 = arith.constant 0 : index
    %3 = vector.load %arg3[%c0_3, %c0_4] : memref<1x384xf32, #tpu.memory_space<vmem>>, vector<1x384xf32>
    %4 = vector.broadcast %3 : vector<1x384xf32> to vector<16x384xf32>
    %5 = arith.addf %2, %4 : vector<16x384xf32>
    %6 = math.tanh %5 : vector<16x384xf32>
    %7 = arith.truncf %6 : vector<16x384xf32> to vector<16x384xbf16>
    %c0_5 = arith.constant 0 : index
    %c0_6 = arith.constant 0 : index
    %8 = vector.load %arg4[%c0_5, %c0_6] : memref<384x512xbf16, #tpu.memory_space<vmem>>, vector<384x512xbf16>
    %cst_7 = arith.constant dense<0.000000e+00> : vector<16x512xf32>
    %9 = tpu.matmul %7, %8, %cst_7 {dimension_numbers = #tpu.dot_dimension_numbers<[1], [0], [0], [1], [0, 0, 1, 1], [], []>} : vector<16x384xbf16>, vector<384x512xbf16>, vector<16x512xf32> -> vector<16x512xf32>
    %c0_8 = arith.constant 0 : index
    %c0_9 = arith.constant 0 : index
    %10 = vector.load %arg5[%c0_8, %c0_9] : memref<1x512xf32, #tpu.memory_space<vmem>>, vector<1x512xf32>
    %11 = vector.broadcast %10 : vector<1x512xf32> to vector<16x512xf32>
    %12 = arith.addf %9, %11 : vector<16x512xf32>
    %13 = math.tanh %12 : vector<16x512xf32>
    %14 = arith.truncf %13 : vector<16x512xf32> to vector<16x512xbf16>
    %c0_10 = arith.constant 0 : index
    %c0_11 = arith.constant 0 : index
    %15 = vector.load %arg6[%c0_10, %c0_11] : memref<512x512xbf16, #tpu.memory_space<vmem>>, vector<512x512xbf16>
    %cst_12 = arith.constant dense<0.000000e+00> : vector<16x512xf32>
    %16 = tpu.matmul %14, %15, %cst_12 {dimension_numbers = #tpu.dot_dimension_numbers<[1], [0], [0], [1], [0, 0, 1, 1], [], []>} : vector<16x512xbf16>, vector<512x512xbf16>, vector<16x512xf32> -> vector<16x512xf32>
    %c0_13 = arith.constant 0 : index
    %c0_14 = arith.constant 0 : index
    %17 = vector.load %arg7[%c0_13, %c0_14] : memref<1x512xf32, #tpu.memory_space<vmem>>, vector<1x512xf32>
    %18 = vector.broadcast %17 : vector<1x512xf32> to vector<16x512xf32>
    %19 = arith.addf %16, %18 : vector<16x512xf32>
    %c0_15 = arith.constant 0 : index
    %c0_16 = arith.constant 0 : index
    %20 = vector.load %arg8[%c0_15, %c0_16] : memref<16x512xf32, #tpu.memory_space<vmem>>, vector<16x512xf32>
    tpu.vector_store %arg8[%c0_15, %c0_16], %19 {strides = array<i32>} : memref<16x512xf32, #tpu.memory_space<vmem>>, vector<16x512xf32>,
    return
  }
  func.func @transform_0(%arg0: i32) -> (i32, i32) {
    %c0_i32 = arith.constant 0 : i32
    %c0_i32_0 = arith.constant 0 : i32
    return %arg0, %c0_i32 : i32, i32
  }
  func.func @transform_1(%arg0: i32) -> (i32, i32) {
    %c0_i32 = arith.constant 0 : i32
    %c0_i32_0 = arith.constant 0 : i32
    %c0_i32_1 = arith.constant 0 : i32
    return %c0_i32, %c0_i32_0 : i32, i32
  }
  func.func @transform_2(%arg0: i32) -> (i32, i32) {
    %c0_i32 = arith.constant 0 : i32
    %c0_i32_0 = arith.constant 0 : i32
    %c0_i32_1 = arith.constant 0 : i32
    return %c0_i32, %c0_i32_0 : i32, i32
  }
  func.func @transform_3(%arg0: i32) -> (i32, i32) {
    %c0_i32 = arith.constant 0 : i32
    %c0_i32_0 = arith.constant 0 : i32
    %c0_i32_1 = arith.constant 0 : i32
    return %c0_i32, %c0_i32_0 : i32, i32
  }
  func.func @transform_4(%arg0: i32) -> (i32, i32) {
    %c0_i32 = arith.constant 0 : i32
    %c0_i32_0 = arith.constant 0 : i32
    %c0_i32_1 = arith.constant 0 : i32
    return %c0_i32, %c0_i32_0 : i32, i32
  }
  func.func @transform_5(%arg0: i32) -> (i32, i32) {
    %c0_i32 = arith.constant 0 : i32
    %c0_i32_0 = arith.constant 0 : i32
    %c0_i32_1 = arith.constant 0 : i32
    return %c0_i32, %c0_i32_0 : i32, i32
  }
  func.func @transform_6(%arg0: i32) -> (i32, i32) {
    %c0_i32 = arith.constant 0 : i32
    %c0_i32_0 = arith.constant 0 : i32
    %c0_i32_1 = arith.constant 0 : i32
    return %c0_i32, %c0_i32_0 : i32, i32
  }
  func.func @transform_7(%arg0: i32) -> (i32, i32) {
    %c0_i32 = arith.constant 0 : i32
    %c0_i32_0 = arith.constant 0 : i32
    return %arg0, %c0_i32 : i32, i32
  }
}

</mosaic_0001>

<llo_original>
// kernel: decoder_forward.1
$region0: #{decoder_forward.1}
  #allocation0 [shape = 'u32[]', space=smem, size = 0x4, offset = 0x4, fixed_abs, tag = 'smem constant byte address 0x4 - core index']
  #allocation1 [shape = 'u32[144,128]{1,0:T(1,128)}', space=vmem, size = 0x12000, scoped, tag = 'internal scratch']
  %s0 = inlined_call_operand.vmem [shape: bf16[16,128], index: 0, kind: input, shape index: {}]
  %s1 = inlined_call_operand.hbm [shape: bf16[128,384], index: 1, kind: input, shape index: {}]
  %s2 = inlined_call_operand.vmem [shape: f32[1,384], index: 2, kind: input, shape index: {}]
  %s3 = inlined_call_operand.hbm [shape: bf16[384,512], index: 3, kind: input, shape index: {}]
  %s4 = inlined_call_operand.vmem [shape: f32[1,512], index: 4, kind: input, shape index: {}]
  %s5 = inlined_call_operand.hbm [shape: bf16[512,512], index: 5, kind: input, shape index: {}]
  %s6 = inlined_call_operand.vmem [shape: f32[1,512], index: 6, kind: input, shape index: {}]
  %s7 = inlined_call_operand.vmem [shape: f32[16,512], index: 7, kind: output, shape index: {}]
  %s8 = sld [smem:[#allocation0]]
  $region50: #{decoder_forward.1} parent=0
    _
  %s10 = ssub.s32 1, %s8
  %s11 = scalar_select 0, %s10, %s8
  $region1: #{decoder_forward.1} parent=0
    #allocation2 [shape = 'u8[98304]{0}', space=vmem, size = 0x18000, scoped, tag = 'input window, operand 1, single buffered']
    #allocation3 [shape = 's32[1]{0}', space=sflag, size = 0x4, scoped, tag = 'scoped memory for decoder_forward.1']
    #allocation4 [shape = 'u8[393216]{0}', space=vmem, size = 0x60000, scoped, tag = 'input window, operand 3, single buffered']
    #allocation5 [shape = 's32[1]{0}', space=sflag, size = 0x4, scoped, tag = 'scoped memory for decoder_forward.1']
    #allocation6 [shape = 'u8[524288]{0}', space=vmem, size = 0x80000, scoped, tag = 'input window, operand 5, single buffered']
    %12 = vsyncpa [#allocation3], 0
    %13 = vsyncpa [#allocation5], 0
    // Predicated region
    $region2: #{decoder_forward.1} parent=1 // pred_check
      _
    $region3: #{decoder_forward.1} parent=1 // pred_check_branch
      %15 = sbr.rel (0) target = $region5
    $region4: #{decoder_forward.1} parent=1 // pred_region
      _
    $region5: #{decoder_forward.1} parent=1 // pred_fallthru
      _
    // Predicated region
    $region6: #{decoder_forward.1} parent=1 // pred_check
      _
    $region7: #{decoder_forward.1} parent=1 // pred_check_branch
      %17 = sbr.rel (0) target = $region9
    $region8: #{decoder_forward.1} parent=1 // pred_region
      %s19 = ssub.s32 3072, 3072
      %20 = vsyncadd [#allocation3], %s19
      %s21 = sshll.u32 [#allocation2], 4
      %s22 = int_to_ptr.vmem [resolvable:$true] %s21
      %27 = dma.hbm_to_vmem [thread:$0]  %s1, 3072, %s22, [#allocation3], 192, 192, 12
    $region9: #{decoder_forward.1} parent=1 // pred_fallthru
      _
    // Predicated region
    $region10: #{decoder_forward.1} parent=1 // pred_check
      _
    $region11: #{decoder_forward.1} parent=1 // pred_check_branch
      %29 = sbr.rel (0) target = $region13
    $region12: #{decoder_forward.1} parent=1 // pred_region
      _
    $region13: #{decoder_forward.1} parent=1 // pred_fallthru
      _
    // Predicated region
    $region14: #{decoder_forward.1} parent=1 // pred_check
      _
    $region15: #{decoder_forward.1} parent=1 // pred_check_branch
      %31 = sbr.rel (0) target = $region17
    $region16: #{decoder_forward.1} parent=1 // pred_region
      %s33 = ssub.s32 12288, 12288
      %34 = vsyncadd [#allocation5], %s33
      %s35 = sshll.u32 [#allocation4], 4
      %s36 = int_to_ptr.vmem [resolvable:$true] %s35
      %41 = dma.hbm_to_vmem [thread:$0]  %s3, 12288, %s36, [#allocation5], 256, 256, 16
    $region17: #{decoder_forward.1} parent=1 // pred_fallthru
      _
    // Predicated region
    $region18: #{decoder_forward.1} parent=1 // pred_check
      _
    $region19: #{decoder_forward.1} parent=1 // pred_check_branch
      %43 = sbr.rel (0) target = $region21
    $region20: #{decoder_forward.1} parent=1 // pred_region
      _
    $region21: #{decoder_forward.1} parent=1 // pred_fallthru
      _
    // Predicated region
    $region22: #{decoder_forward.1} parent=1 // pred_check
      _
    $region23: #{decoder_forward.1} parent=1 // pred_check_branch
      %45 = sbr.rel (0) target = $region25
    $region24: #{decoder_forward.1} parent=1 // pred_region
      %s47 = ssub.s32 16384, 16384
      %48 = vsyncadd [#allocation5], %s47
      %s49 = sshll.u32 [#allocation6], 4
      %s50 = int_to_ptr.vmem [resolvable:$true] %s49
      %55 = dma.hbm_to_vmem [thread:$0]  %s5, 16384, %s50, [#allocation5], 256, 256, 16
    $region25: #{decoder_forward.1} parent=1 // pred_fallthru
      _
    // Predicated region
    $region26: #{decoder_forward.1} parent=1 // pred_check
      _
    $region27: #{decoder_forward.1} parent=1 // pred_check_branch
      %57 = sbr.rel (0) target = $region29
    $region28: #{decoder_forward.1} parent=1 // pred_region
      _
    $region29: #{decoder_forward.1} parent=1 // pred_fallthru
      _
    // Predicated region
    $region30: #{decoder_forward.1} parent=1 // pred_check
      _
    $region31: #{decoder_forward.1} parent=1 // pred_check_branch
      %59 = sbr.rel (0) target = $region33
    $region32: #{decoder_forward.1} parent=1 // pred_region
      %60 = dma.done [#allocation3], 3072
    $region33: #{decoder_forward.1} parent=1 // pred_fallthru
      _
    // Predicated region
    $region34: #{decoder_forward.1} parent=1 // pred_check
      _
    $region35: #{decoder_forward.1} parent=1 // pred_check_branch
      %62 = sbr.rel (0) target = $region37
    $region36: #{decoder_forward.1} parent=1 // pred_region
      %63 = dma.done [#allocation5], 12288
    $region37: #{decoder_forward.1} parent=1 // pred_fallthru
      _
    // Predicated region
    $region38: #{decoder_forward.1} parent=1 // pred_check
      _
    $region39: #{decoder_forward.1} parent=1 // pred_check_branch
      %65 = sbr.rel (0) target = $region41
    $region40: #{decoder_forward.1} parent=1 // pred_region
      %66 = dma.done [#allocation5], 16384
    $region41: #{decoder_forward.1} parent=1 // pred_fallthru
      _
    %v68 = vld [vmem:[%s0] sm:$0xf]
    %v69 = vld [vmem:[%s0 + $0x4] sm:$0xf]
    %v70 = vld [vmem:[#allocation2] sm:$0xff]
    %v71 = vld [vmem:[#allocation2 + $0x8] sm:$0xf]
    %v72 = vld [vmem:[#allocation2 + $0xc] sm:$0xff]
    %v73 = vld [vmem:[#allocation2 + $0x14] sm:$0xf]
    %v74 = vld [vmem:[#allocation2 + $0x18] sm:$0xff]
    %v75 = vld [vmem:[#allocation2 + $0x20] sm:$0xf]
    %v76 = vld [vmem:[#allocation2 + $0x24] sm:$0xff]
    %v77 = vld [vmem:[#allocation2 + $0x2c] sm:$0xf]
    %v78 = vld [vmem:[#allocation2 + $0x30] sm:$0xff]
    %v79 = vld [vmem:[#allocation2 + $0x38] sm:$0xf]
    %v80 = vld [vmem:[#allocation2 + $0x3c] sm:$0xff]
    %v81 = vld [vmem:[#allocation2 + $0x44] sm:$0xf]
    %v82 = vld [vmem:[#allocation2 + $0x48] sm:$0xff]
    %v83 = vld [vmem:[#allocation2 + $0x50] sm:$0xf]
    %v84 = vld [vmem:[#allocation2 + $0x54] sm:$0xff]
    %v85 = vld [vmem:[#allocation2 + $0x5c] sm:$0xf]
    %v86 = vld [vmem:[#allocation2 + $0x60] sm:$0xff]
    %v87 = vld [vmem:[#allocation2 + $0x68] sm:$0xf]
    %v88 = vld [vmem:[#allocation2 + $0x6c] sm:$0xff]
    %v89 = vld [vmem:[#allocation2 + $0x74] sm:$0xf]
    %v90 = vld [vmem:[#allocation2 + $0x78] sm:$0xff]
    %v91 = vld [vmem:[#allocation2 + $0x80] sm:$0xf]
    %v92 = vld [vmem:[#allocation2 + $0x84] sm:$0xff]
    %v93 = vld [vmem:[#allocation2 + $0x8c] sm:$0xf]
    %v94 = vld [vmem:[#allocation2 + $0x90] sm:$0xff]
    %v95 = vld [vmem:[#allocation2 + $0x98] sm:$0xf]
    %v96 = vld [vmem:[#allocation2 + $0x9c] sm:$0xff]
    %v97 = vld [vmem:[#allocation2 + $0xa4] sm:$0xf]
    %v98 = vld [vmem:[#allocation2 + $0xa8] sm:$0xff]
    %v99 = vld [vmem:[#allocation2 + $0xb0] sm:$0xf]
    %v100 = vld [vmem:[#allocation2 + $0xb4] sm:$0xff]
    %v101 = vld [vmem:[#allocation2 + $0xbc] sm:$0xf]
    %v102 = vld [vmem:[%s2] sm:$0x7]
    %v104 = vlaneseq
    %v105 = vshrl.u32 %v104, 7
    %v106 = vsub.s32 0, %v105
    %v107 = vrot.slane %v102, %v106
    %v108 = vlaneseq
    %v109 = vshrl.u32 %v108, 7
    %v110 = vsub.s32 1, %v109
    %v111 = vrot.slane %v102, %v110
    %v112 = vlaneseq
    %v113 = vshrl.u32 %v112, 7
    %v114 = vsub.s32 2, %v113
    %v115 = vrot.slane %v102, %v114
    %v121 = vunpack.c.l.b16 %v68
    %v122 = vunpack.c.l.b16 %v69
    %v123 = vpack.c.b16 %v122, %v121
    %v157 = vunpack.c.l.b16 %v70
    %v158 = vunpack.c.h.b16 %v70
    %v159 = vunpack.c.l.b16 %v71
    %v160 = vunpack.c.l.b16 %v72
    %v161 = vunpack.c.h.b16 %v72
    %v162 = vunpack.c.l.b16 %v73
    %v163 = vunpack.c.l.b16 %v74
    %v164 = vunpack.c.h.b16 %v74
    %v165 = vunpack.c.l.b16 %v75
    %v166 = vunpack.c.l.b16 %v76
    %v167 = vunpack.c.h.b16 %v76
    %v168 = vunpack.c.l.b16 %v77
    %v169 = vunpack.c.l.b16 %v78
    %v170 = vunpack.c.h.b16 %v78
    %v171 = vunpack.c.l.b16 %v79
    %v172 = vunpack.c.l.b16 %v80
    %v173 = vunpack.c.h.b16 %v80
    %v174 = vunpack.c.l.b16 %v81
    %v175 = vunpack.c.l.b16 %v82
    %v176 = vunpack.c.h.b16 %v82
    %v177 = vunpack.c.l.b16 %v83
    %v178 = vunpack.c.l.b16 %v84
    %v179 = vunpack.c.h.b16 %v84
    %v180 = vunpack.c.l.b16 %v85
    %v181 = vunpack.c.l.b16 %v86
    %v182 = vunpack.c.h.b16 %v86
    %v183 = vunpack.c.l.b16 %v87
    %v184 = vunpack.c.l.b16 %v88
    %v185 = vunpack.c.h.b16 %v88
    %v186 = vunpack.c.l.b16 %v89
    %v187 = vunpack.c.l.b16 %v90
    %v188 = vunpack.c.h.b16 %v90
    %v189 = vunpack.c.l.b16 %v91
    %v190 = vunpack.c.l.b16 %v92
    %v191 = vunpack.c.h.b16 %v92
    %v192 = vunpack.c.l.b16 %v93
    %v193 = vunpack.c.l.b16 %v94
    %v194 = vunpack.c.h.b16 %v94
    %v195 = vunpack.c.l.b16 %v95
    %v196 = vunpack.c.l.b16 %v96
    %v197 = vunpack.c.h.b16 %v96
    %v198 = vunpack.c.l.b16 %v97
    %v199 = vunpack.c.l.b16 %v98
    %v200 = vunpack.c.h.b16 %v98
    %v201 = vunpack.c.l.b16 %v99
    %v202 = vunpack.c.l.b16 %v100
    %v203 = vunpack.c.h.b16 %v100
    %v204 = vunpack.c.l.b16 %v101
    %v205 = vpack.c.b16 %v160, %v157
    %v206 = vpack.c.b16 %v161, %v158
    %v207 = vpack.c.b16 %v162, %v159
    %v208 = vpack.c.b16 %v166, %v163
    %v209 = vpack.c.b16 %v167, %v164
    %v210 = vpack.c.b16 %v168, %v165
    %v211 = vpack.c.b16 %v172, %v169
    %v212 = vpack.c.b16 %v173, %v170
    %v213 = vpack.c.b16 %v174, %v171
    %v214 = vpack.c.b16 %v178, %v175
    %v215 = vpack.c.b16 %v179, %v176
    %v216 = vpack.c.b16 %v180, %v177
    %v217 = vpack.c.b16 %v184, %v181
    %v218 = vpack.c.b16 %v185, %v182
    %v219 = vpack.c.b16 %v186, %v183
    %v220 = vpack.c.b16 %v190, %v187
    %v221 = vpack.c.b16 %v191, %v188
    %v222 = vpack.c.b16 %v192, %v189
    %v223 = vpack.c.b16 %v196, %v193
    %v224 = vpack.c.b16 %v197, %v194
    %v225 = vpack.c.b16 %v198, %v195
    %v226 = vpack.c.b16 %v202, %v199
    %v227 = vpack.c.b16 %v203, %v200
    %v228 = vpack.c.b16 %v204, %v201
    %253 = vmatprep.subr.bf16.mxu0 %v206
    %254 = vmatpush1.bf16.msra.mxu0 %v205
    %255 = vmatprep.subr.bf16.mxu0 %v209
    %256 = vmatpush1.bf16.msra.mxu0 %v208
    %257 = vmatprep.subr.bf16.mxu0 %v212
    %258 = vmatpush1.bf16.msra.mxu0 %v211
    %259 = vmatprep.subr.bf16.mxu0 %v215
    %260 = vmatpush1.bf16.msra.mxu0 %v214
    %261 = vmatprep.subr.bf16.mxu0 %v218
    %262 = vmatpush1.bf16.msra.mxu0 %v217
    %263 = vmatprep.subr.bf16.mxu0 %v221
    %264 = vmatpush1.bf16.msra.mxu0 %v220
    %265 = vmatprep.subr.bf16.mxu0 %v224
    %266 = vmatpush1.bf16.msra.mxu0 %v223
    %267 = vmatprep.subr.bf16.mxu0 %v227
    %268 = vmatpush1.bf16.msra.mxu0 %v226
    %269 = vmatprep.subr.bf16.mxu0 0
    %270 = vmatpush1.bf16.msra.mxu0 0
    %271 = vmatprep.subr.bf16.mxu0 0
    %272 = vmatpush1.bf16.msra.mxu0 0
    %273 = vmatprep.subr.bf16.mxu0 0
    %274 = vmatpush1.bf16.msra.mxu0 0
    %275 = vmatprep.subr.bf16.mxu0 0
    %276 = vmatpush1.bf16.msra.mxu0 0
    %277 = vmatprep.subr.bf16.mxu0 0
    %278 = vmatpush1.bf16.msra.mxu0 0
    %279 = vmatprep.subr.bf16.mxu0 0
    %280 = vmatpush1.bf16.msra.mxu0 0
    %281 = vmatprep.subr.bf16.mxu0 0
    %282 = vmatpush1.bf16.msra.mxu0 0
    %283 = vmatprep.subr.bf16.mxu0 0
    %284 = vmatpush1.bf16.msra.mxu0 0
    %285 = vmatprep.mubr.bf16.mxu0 0
    %286 = vmatmul.mubr.bf16.gmra.mrb[0].mxu0 %v123
    %v287 = vpop.f32.mrb[0].mxu0
    %v288 = vadd.f32 %v107, %v287
    %v289 = vpop.f32.mrb[0].mxu0
    %v290 = vadd.f32 %v111, %v289
    %v291 = vpop.f32.mrb[0].mxu0
    %v292 = vadd.f32 %v107, %v291
    %v293 = vpop.f32.mrb[0].mxu0
    %v294 = vadd.f32 %v111, %v293
    %295 = vdwg.mxu0
    %296 = vmatprep.subr.bf16.mxu0 0
    %297 = vmatpush1.bf16.msra.mxu0 %v207
    %298 = vmatprep.subr.bf16.mxu0 0
    %299 = vmatpush1.bf16.msra.mxu0 %v210
    %300 = vmatprep.subr.bf16.mxu0 0
    %301 = vmatpush1.bf16.msra.mxu0 %v213
    %302 = vmatprep.subr.bf16.mxu0 0
    %303 = vmatpush1.bf16.msra.mxu0 %v216
    %304 = vmatprep.subr.bf16.mxu0 0
    %305 = vmatpush1.bf16.msra.mxu0 %v219
    %306 = vmatprep.subr.bf16.mxu0 0
    %307 = vmatpush1.bf16.msra.mxu0 %v222
    %308 = vmatprep.subr.bf16.mxu0 0
    %309 = vmatpush1.bf16.msra.mxu0 %v225
    %310 = vmatprep.subr.bf16.mxu0 0
    %311 = vmatpush1.bf16.msra.mxu0 %v228
    %312 = vmatprep.subr.bf16.mxu0 0
    %313 = vmatpush1.bf16.msra.mxu0 0
    %314 = vmatprep.subr.bf16.mxu0 0
    %315 = vmatpush1.bf16.msra.mxu0 0
    %316 = vmatprep.subr.bf16.mxu0 0
    %317 = vmatpush1.bf16.msra.mxu0 0
    %318 = vmatprep.subr.bf16.mxu0 0
    %319 = vmatpush1.bf16.msra.mxu0 0
    %320 = vmatprep.subr.bf16.mxu0 0
    %321 = vmatpush1.bf16.msra.mxu0 0
    %322 = vmatprep.subr.bf16.mxu0 0
    %323 = vmatpush1.bf16.msra.mxu0 0
    %324 = vmatprep.subr.bf16.mxu0 0
    %325 = vmatpush1.bf16.msra.mxu0 0
    %326 = vmatprep.subr.bf16.mxu0 0
    %327 = vmatpush1.bf16.msra.mxu0 0
    %328 = vmatprep.mubr.bf16.mxu0 0
    %329 = vmatmul.mubr.bf16.gmra.mrb[0].mxu0 %v123
    %v330 = vpop.f32.mrb[0].mxu0
    %v331 = vadd.f32 %v115, %v330
    %v332 = vpop.f32.mrb[0].mxu0
    %v333 = vpop.f32.mrb[0].mxu0
    %v334 = vadd.f32 %v115, %v333
    %v335 = vpop.f32.mrb[0].mxu0
    %336 = vdwg.mxu0
    %v337 = vtanh.pop %v288
    %v338 = vtanh.pop %v290
    %v339 = vtanh.pop %v331
    %v340 = vtanh.pop %v292
    %v341 = vtanh.pop %v294
    %v342 = vtanh.pop %v334
    %v343 = vpack.c.bf16 %v340, %v337
    %v344 = vpack.c.bf16 %v341, %v338
    %v345 = vpack.c.bf16 %v342, %v339
    %v346 = vld [vmem:[#allocation4] sm:$0xff]
    %v347 = vld [vmem:[#allocation4 + $0x8] sm:$0xff]
    %v348 = vld [vmem:[#allocation4 + $0x10] sm:$0xff]
    %v349 = vld [vmem:[#allocation4 + $0x18] sm:$0xff]
    %v350 = vld [vmem:[#allocation4 + $0x20] sm:$0xff]
    %v351 = vld [vmem:[#allocation4 + $0x28] sm:$0xff]
    %v352 = vld [vmem:[#allocation4 + $0x30] sm:$0xff]
    %v353 = vld [vmem:[#allocation4 + $0x38] sm:$0xff]
    %v354 = vld [vmem:[#allocation4 + $0x40] sm:$0xff]
    %v355 = vld [vmem:[#allocation4 + $0x48] sm:$0xff]
    %v356 = vld [vmem:[#allocation4 + $0x50] sm:$0xff]
    %v357 = vld [vmem:[#allocation4 + $0x58] sm:$0xff]
    %v358 = vld [vmem:[#allocation4 + $0x60] sm:$0xff]
    %v359 = vld [vmem:[#allocation4 + $0x68] sm:$0xff]
    %v360 = vld [vmem:[#allocation4 + $0x70] sm:$0xff]
    %v361 = vld [vmem:[#allocation4 + $0x78] sm:$0xff]
    %v362 = vld [vmem:[#allocation4 + $0x80] sm:$0xff]
    %v363 = vld [vmem:[#allocation4 + $0x88] sm:$0xff]
    %v364 = vld [vmem:[#allocation4 + $0x90] sm:$0xff]
    %v365 = vld [vmem:[#allocation4 + $0x98] sm:$0xff]
    %v366 = vld [vmem:[#allocation4 + $0xa0] sm:$0xff]
    %v367 = vld [vmem:[#allocation4 + $0xa8] sm:$0xff]
    %v368 = vld [vmem:[#allocation4 + $0xb0] sm:$0xff]
    %v369 = vld [vmem:[#allocation4 + $0xb8] sm:$0xff]
    %v370 = vld [vmem:[#allocation4 + $0xc0] sm:$0xff]
    %v371 = vld [vmem:[#allocation4 + $0xc8] sm:$0xff]
    %v372 = vld [vmem:[#allocation4 + $0xd0] sm:$0xff]
    %v373 = vld [vmem:[#allocation4 + $0xd8] sm:$0xff]
    %v374 = vld [vmem:[#allocation4 + $0xe0] sm:$0xff]
    %v375 = vld [vmem:[#allocation4 + $0xe8] sm:$0xff]
    %v376 = vld [vmem:[#allocation4 + $0xf0] sm:$0xff]
    %v377 = vld [vmem:[#allocation4 + $0xf8] sm:$0xff]
    %v378 = vld [vmem:[#allocation4 + $0x100] sm:$0xff]
    %v379 = vld [vmem:[#allocation4 + $0x108] sm:$0xff]
    %v380 = vld [vmem:[#allocation4 + $0x110] sm:$0xff]
    %v381 = vld [vmem:[#allocation4 + $0x118] sm:$0xff]
    %v382 = vld [vmem:[#allocation4 + $0x120] sm:$0xff]
    %v383 = vld [vmem:[#allocation4 + $0x128] sm:$0xff]
    %v384 = vld [vmem:[#allocation4 + $0x130] sm:$0xff]
    %v385 = vld [vmem:[#allocation4 + $0x138] sm:$0xff]
    %v386 = vld [vmem:[#allocation4 + $0x140] sm:$0xff]
    %v387 = vld [vmem:[#allocation4 + $0x148] sm:$0xff]
    %v388 = vld [vmem:[#allocation4 + $0x150] sm:$0xff]
    %v389 = vld [vmem:[#allocation4 + $0x158] sm:$0xff]
    %v390 = vld [vmem:[#allocation4 + $0x160] sm:$0xff]
    %v391 = vld [vmem:[#allocation4 + $0x168] sm:$0xff]
    %v392 = vld [vmem:[#allocation4 + $0x170] sm:$0xff]
    %v393 = vld [vmem:[#allocation4 + $0x178] sm:$0xff]
    %v394 = vld [vmem:[#allocation4 + $0x180] sm:$0xff]
    %v395 = vld [vmem:[#allocation4 + $0x188] sm:$0xff]
    %v396 = vld [vmem:[#allocation4 + $0x190] sm:$0xff]
    %v397 = vld [vmem:[#allocation4 + $0x198] sm:$0xff]
    %v398 = vld [vmem:[#allocation4 + $0x1a0] sm:$0xff]
    %v399 = vld [vmem:[#allocation4 + $0x1a8] sm:$0xff]
    %v400 = vld [vmem:[#allocation4 + $0x1b0] sm:$0xff]
    %v401 = vld [vmem:[#allocation4 + $0x1b8] sm:$0xff]
    %v402 = vld [vmem:[#allocation4 + $0x1c0] sm:$0xff]
    %v403 = vld [vmem:[#allocation4 + $0x1c8] sm:$0xff]
    %v404 = vld [vmem:[#allocation4 + $0x1d0] sm:$0xff]
    %v405 = vld [vmem:[#allocation4 + $0x1d8] sm:$0xff]
    %v406 = vld [vmem:[#allocation4 + $0x1e0] sm:$0xff]
    %v407 = vld [vmem:[#allocation4 + $0x1e8] sm:$0xff]
    %v408 = vld [vmem:[#allocation4 + $0x1f0] sm:$0xff]
    %v409 = vld [vmem:[#allocation4 + $0x1f8] sm:$0xff]
    %v410 = vld [vmem:[#allocation4 + $0x200] sm:$0xff]
    %v411 = vld [vmem:[#allocation4 + $0x208] sm:$0xff]
    %v412 = vld [vmem:[#allocation4 + $0x210] sm:$0xff]
    %v413 = vld [vmem:[#allocation4 + $0x218] sm:$0xff]
    %v414 = vld [vmem:[#allocation4 + $0x220] sm:$0xff]
    %v415 = vld [vmem:[#allocation4 + $0x228] sm:$0xff]
    %v416 = vld [vmem:[#allocation4 + $0x230] sm:$0xff]
    %v417 = vld [vmem:[#allocation4 + $0x238] sm:$0xff]
    %v418 = vld [vmem:[#allocation4 + $0x240] sm:$0xff]
    %v419 = vld [vmem:[#allocation4 + $0x248] sm:$0xff]
    %v420 = vld [vmem:[#allocation4 + $0x250] sm:$0xff]
    %v421 = vld [vmem:[#allocation4 + $0x258] sm:$0xff]
    %v422 = vld [vmem:[#allocation4 + $0x260] sm:$0xff]
    %v423 = vld [vmem:[#allocation4 + $0x268] sm:$0xff]
    %v424 = vld [vmem:[#allocation4 + $0x270] sm:$0xff]
    %v425 = vld [vmem:[#allocation4 + $0x278] sm:$0xff]
    %v426 = vld [vmem:[#allocation4 + $0x280] sm:$0xff]
    %v427 = vld [vmem:[#allocation4 + $0x288] sm:$0xff]
    %v428 = vld [vmem:[#allocation4 + $0x290] sm:$0xff]
    %v429 = vld [vmem:[#allocation4 + $0x298] sm:$0xff]
    %v430 = vld [vmem:[#allocation4 + $0x2a0] sm:$0xff]
    %v431 = vld [vmem:[#allocation4 + $0x2a8] sm:$0xff]
    %v432 = vld [vmem:[#allocation4 + $0x2b0] sm:$0xff]
    %v433 = vld [vmem:[#allocation4 + $0x2b8] sm:$0xff]
    %v434 = vld [vmem:[#allocation4 + $0x2c0] sm:$0xff]
    %v435 = vld [vmem:[#allocation4 + $0x2c8] sm:$0xff]
    %v436 = vld [vmem:[#allocation4 + $0x2d0] sm:$0xff]
    %v437 = vld [vmem:[#allocation4 + $0x2d8] sm:$0xff]
    %v438 = vld [vmem:[#allocation4 + $0x2e0] sm:$0xff]
    %v439 = vld [vmem:[#allocation4 + $0x2e8] sm:$0xff]
    %v440 = vld [vmem:[#allocation4 + $0x2f0] sm:$0xff]
    %v441 = vld [vmem:[#allocation4 + $0x2f8] sm:$0xff]
    %v442 = vld [vmem:[%s4] sm:$0xf]
    %v444 = vlaneseq
    %v445 = vshrl.u32 %v444, 7
    %v446 = vsub.s32 0, %v445
    %v447 = vrot.slane %v442, %v446
    %v448 = vlaneseq
    %v449 = vshrl.u32 %v448, 7
    %v450 = vsub.s32 1, %v449
    %v451 = vrot.slane %v442, %v450
    %v452 = vlaneseq
    %v453 = vshrl.u32 %v452, 7
    %v454 = vsub.s32 2, %v453
    %v455 = vrot.slane %v442, %v454
    %v456 = vlaneseq
    %v457 = vshrl.u32 %v456, 7
    %v458 = vsub.s32 3, %v457
    %v459 = vrot.slane %v442, %v458
    %v560 = vunpack.c.l.b16 %v346
    %v561 = vunpack.c.h.b16 %v346
    %v562 = vunpack.c.l.b16 %v347
    %v563 = vunpack.c.h.b16 %v347
    %v564 = vunpack.c.l.b16 %v348
    %v565 = vunpack.c.h.b16 %v348
    %v566 = vunpack.c.l.b16 %v349
    %v567 = vunpack.c.h.b16 %v349
    %v568 = vunpack.c.l.b16 %v350
    %v569 = vunpack.c.h.b16 %v350
    %v570 = vunpack.c.l.b16 %v351
    %v571 = vunpack.c.h.b16 %v351
    %v572 = vunpack.c.l.b16 %v352
    %v573 = vunpack.c.h.b16 %v352
    %v574 = vunpack.c.l.b16 %v353
    %v575 = vunpack.c.h.b16 %v353
    %v576 = vunpack.c.l.b16 %v354
    %v577 = vunpack.c.h.b16 %v354
    %v578 = vunpack.c.l.b16 %v355
    %v579 = vunpack.c.h.b16 %v355
    %v580 = vunpack.c.l.b16 %v356
    %v581 = vunpack.c.h.b16 %v356
    %v582 = vunpack.c.l.b16 %v357
    %v583 = vunpack.c.h.b16 %v357
    %v584 = vunpack.c.l.b16 %v358
    %v585 = vunpack.c.h.b16 %v358
    %v586 = vunpack.c.l.b16 %v359
    %v587 = vunpack.c.h.b16 %v359
    %v588 = vunpack.c.l.b16 %v360
    %v589 = vunpack.c.h.b16 %v360
    %v590 = vunpack.c.l.b16 %v361
    %v591 = vunpack.c.h.b16 %v361
    %v592 = vunpack.c.l.b16 %v362
    %v593 = vunpack.c.h.b16 %v362
    %v594 = vunpack.c.l.b16 %v363
    %v595 = vunpack.c.h.b16 %v363
    %v596 = vunpack.c.l.b16 %v364
    %v597 = vunpack.c.h.b16 %v364
    %v598 = vunpack.c.l.b16 %v365
    %v599 = vunpack.c.h.b16 %v365
    %v600 = vunpack.c.l.b16 %v366
    %v601 = vunpack.c.h.b16 %v366
    %v602 = vunpack.c.l.b16 %v367
    %v603 = vunpack.c.h.b16 %v367
    %v604 = vunpack.c.l.b16 %v368
    %v605 = vunpack.c.h.b16 %v368
    %v606 = vunpack.c.l.b16 %v369
    %v607 = vunpack.c.h.b16 %v369
    %v608 = vunpack.c.l.b16 %v370
    %v609 = vunpack.c.h.b16 %v370
    %v610 = vunpack.c.l.b16 %v371
    %v611 = vunpack.c.h.b16 %v371
    %v612 = vunpack.c.l.b16 %v372
    %v613 = vunpack.c.h.b16 %v372
    %v614 = vunpack.c.l.b16 %v373
    %v615 = vunpack.c.h.b16 %v373
    %v616 = vunpack.c.l.b16 %v374
    %v617 = vunpack.c.h.b16 %v374
    %v618 = vunpack.c.l.b16 %v375
    %v619 = vunpack.c.h.b16 %v375
    %v620 = vunpack.c.l.b16 %v376
    %v621 = vunpack.c.h.b16 %v376
    %v622 = vunpack.c.l.b16 %v377
    %v623 = vunpack.c.h.b16 %v377
    %v624 = vunpack.c.l.b16 %v378
    %v625 = vunpack.c.h.b16 %v378
    %v626 = vunpack.c.l.b16 %v379
    %v627 = vunpack.c.h.b16 %v379
    %v628 = vunpack.c.l.b16 %v380
    %v629 = vunpack.c.h.b16 %v380
    %v630 = vunpack.c.l.b16 %v381
    %v631 = vunpack.c.h.b16 %v381
    %v632 = vunpack.c.l.b16 %v382
    %v633 = vunpack.c.h.b16 %v382
    %v634 = vunpack.c.l.b16 %v383
    %v635 = vunpack.c.h.b16 %v383
    %v636 = vunpack.c.l.b16 %v384
    %v637 = vunpack.c.h.b16 %v384
    %v638 = vunpack.c.l.b16 %v385
    %v639 = vunpack.c.h.b16 %v385
    %v640 = vunpack.c.l.b16 %v386
    %v641 = vunpack.c.h.b16 %v386
    %v642 = vunpack.c.l.b16 %v387
    %v643 = vunpack.c.h.b16 %v387
    %v644 = vunpack.c.l.b16 %v388
    %v645 = vunpack.c.h.b16 %v388
    %v646 = vunpack.c.l.b16 %v389
    %v647 = vunpack.c.h.b16 %v389
    %v648 = vunpack.c.l.b16 %v390
    %v649 = vunpack.c.h.b16 %v390
    %v650 = vunpack.c.l.b16 %v391
    %v651 = vunpack.c.h.b16 %v391
    %v652 = vunpack.c.l.b16 %v392
    %v653 = vunpack.c.h.b16 %v392
    %v654 = vunpack.c.l.b16 %v393
    %v655 = vunpack.c.h.b16 %v393
    %v656 = vunpack.c.l.b16 %v394
    %v657 = vunpack.c.h.b16 %v394
    %v658 = vunpack.c.l.b16 %v395
    %v659 = vunpack.c.h.b16 %v395
    %v660 = vunpack.c.l.b16 %v396
    %v661 = vunpack.c.h.b16 %v396
    %v662 = vunpack.c.l.b16 %v397
    %v663 = vunpack.c.h.b16 %v397
    %v664 = vunpack.c.l.b16 %v398
    %v665 = vunpack.c.h.b16 %v398
    %v666 = vunpack.c.l.b16 %v399
    %v667 = vunpack.c.h.b16 %v399
    %v668 = vunpack.c.l.b16 %v400
    %v669 = vunpack.c.h.b16 %v400
    %v670 = vunpack.c.l.b16 %v401
    %v671 = vunpack.c.h.b16 %v401
    %v672 = vunpack.c.l.b16 %v402
    %v673 = vunpack.c.h.b16 %v402
    %v674 = vunpack.c.l.b16 %v403
    %v675 = vunpack.c.h.b16 %v403
    %v676 = vunpack.c.l.b16 %v404
    %v677 = vunpack.c.h.b16 %v404
    %v678 = vunpack.c.l.b16 %v405
    %v679 = vunpack.c.h.b16 %v405
    %v680 = vunpack.c.l.b16 %v406
    %v681 = vunpack.c.h.b16 %v406
    %v682 = vunpack.c.l.b16 %v407
    %v683 = vunpack.c.h.b16 %v407
    %v684 = vunpack.c.l.b16 %v408
    %v685 = vunpack.c.h.b16 %v408
    %v686 = vunpack.c.l.b16 %v409
    %v687 = vunpack.c.h.b16 %v409
    %v688 = vunpack.c.l.b16 %v410
    %v689 = vunpack.c.h.b16 %v410
    %v690 = vunpack.c.l.b16 %v411
    %v691 = vunpack.c.h.b16 %v411
    %v692 = vunpack.c.l.b16 %v412
    %v693 = vunpack.c.h.b16 %v412
    %v694 = vunpack.c.l.b16 %v413
    %v695 = vunpack.c.h.b16 %v413
    %v696 = vunpack.c.l.b16 %v414
    %v697 = vunpack.c.h.b16 %v414
    %v698 = vunpack.c.l.b16 %v415
    %v699 = vunpack.c.h.b16 %v415
    %v700 = vunpack.c.l.b16 %v416
    %v701 = vunpack.c.h.b16 %v416
    %v702 = vunpack.c.l.b16 %v417
    %v703 = vunpack.c.h.b16 %v417
    %v704 = vunpack.c.l.b16 %v418
    %v705 = vunpack.c.h.b16 %v418
    %v706 = vunpack.c.l.b16 %v419
    %v707 = vunpack.c.h.b16 %v419
    %v708 = vunpack.c.l.b16 %v420
    %v709 = vunpack.c.h.b16 %v420
    %v710 = vunpack.c.l.b16 %v421
    %v711 = vunpack.c.h.b16 %v421
    %v712 = vunpack.c.l.b16 %v422
    %v713 = vunpack.c.h.b16 %v422
    %v714 = vunpack.c.l.b16 %v423
    %v715 = vunpack.c.h.b16 %v423
    %v716 = vunpack.c.l.b16 %v424
    %v717 = vunpack.c.h.b16 %v424
    %v718 = vunpack.c.l.b16 %v425
    %v719 = vunpack.c.h.b16 %v425
    %v720 = vunpack.c.l.b16 %v426
    %v721 = vunpack.c.h.b16 %v426
    %v722 = vunpack.c.l.b16 %v427
    %v723 = vunpack.c.h.b16 %v427
    %v724 = vunpack.c.l.b16 %v428
    %v725 = vunpack.c.h.b16 %v428
    %v726 = vunpack.c.l.b16 %v429
    %v727 = vunpack.c.h.b16 %v429
    %v728 = vunpack.c.l.b16 %v430
    %v729 = vunpack.c.h.b16 %v430
    %v730 = vunpack.c.l.b16 %v431
    %v731 = vunpack.c.h.b16 %v431
    %v732 = vunpack.c.l.b16 %v432
    %v733 = vunpack.c.h.b16 %v432
    %v734 = vunpack.c.l.b16 %v433
    %v735 = vunpack.c.h.b16 %v433
    %v736 = vunpack.c.l.b16 %v434
    %v737 = vunpack.c.h.b16 %v434
    %v738 = vunpack.c.l.b16 %v435
    %v739 = vunpack.c.h.b16 %v435
    %v740 = vunpack.c.l.b16 %v436
    %v741 = vunpack.c.h.b16 %v436
    %v742 = vunpack.c.l.b16 %v437
    %v743 = vunpack.c.h.b16 %v437
    %v744 = vunpack.c.l.b16 %v438
    %v745 = vunpack.c.h.b16 %v438
    %v746 = vunpack.c.l.b16 %v439
    %v747 = vunpack.c.h.b16 %v439
    %v748 = vunpack.c.l.b16 %v440
    %v749 = vunpack.c.h.b16 %v440
    %v750 = vunpack.c.l.b16 %v441
    %v751 = vunpack.c.h.b16 %v441
    %v752 = vpack.c.b16 %v564, %v560
    %v753 = vpack.c.b16 %v565, %v561
    %v754 = vpack.c.b16 %v566, %v562
    %v755 = vpack.c.b16 %v567, %v563
    %v756 = vpack.c.b16 %v572, %v568
    %v757 = vpack.c.b16 %v573, %v569
    %v758 = vpack.c.b16 %v574, %v570
    %v759 = vpack.c.b16 %v575, %v571
    %v760 = vpack.c.b16 %v580, %v576
    %v761 = vpack.c.b16 %v581, %v577
    %v762 = vpack.c.b16 %v582, %v578
    %v763 = vpack.c.b16 %v583, %v579
    %v764 = vpack.c.b16 %v588, %v584
    %v765 = vpack.c.b16 %v589, %v585
    %v766 = vpack.c.b16 %v590, %v586
    %v767 = vpack.c.b16 %v591, %v587
    %v768 = vpack.c.b16 %v596, %v592
    %v769 = vpack.c.b16 %v597, %v593
    %v770 = vpack.c.b16 %v598, %v594
    %v771 = vpack.c.b16 %v599, %v595
    %v772 = vpack.c.b16 %v604, %v600
    %v773 = vpack.c.b16 %v605, %v601
    %v774 = vpack.c.b16 %v606, %v602
    %v775 = vpack.c.b16 %v607, %v603
    %v776 = vpack.c.b16 %v612, %v608
    %v777 = vpack.c.b16 %v613, %v609
    %v778 = vpack.c.b16 %v614, %v610
    %v779 = vpack.c.b16 %v615, %v611
    %v780 = vpack.c.b16 %v620, %v616
    %v781 = vpack.c.b16 %v621, %v617
    %v782 = vpack.c.b16 %v622, %v618
    %v783 = vpack.c.b16 %v623, %v619
    %v784 = vpack.c.b16 %v628, %v624
    %v785 = vpack.c.b16 %v629, %v625
    %v786 = vpack.c.b16 %v630, %v626
    %v787 = vpack.c.b16 %v631, %v627
    %v788 = vpack.c.b16 %v636, %v632
    %v789 = vpack.c.b16 %v637, %v633
    %v790 = vpack.c.b16 %v638, %v634
    %v791 = vpack.c.b16 %v639, %v635
    %v792 = vpack.c.b16 %v644, %v640
    %v793 = vpack.c.b16 %v645, %v641
    %v794 = vpack.c.b16 %v646, %v642
    %v795 = vpack.c.b16 %v647, %v643
    %v796 = vpack.c.b16 %v652, %v648
    %v797 = vpack.c.b16 %v653, %v649
    %v798 = vpack.c.b16 %v654, %v650
    %v799 = vpack.c.b16 %v655, %v651
    %v800 = vpack.c.b16 %v660, %v656
    %v801 = vpack.c.b16 %v661, %v657
    %v802 = vpack.c.b16 %v662, %v658
    %v803 = vpack.c.b16 %v663, %v659
    %v804 = vpack.c.b16 %v668, %v664
    %v805 = vpack.c.b16 %v669, %v665
    %v806 = vpack.c.b16 %v670, %v666
    %v807 = vpack.c.b16 %v671, %v667
    %v808 = vpack.c.b16 %v676, %v672
    %v809 = vpack.c.b16 %v677, %v673
    %v810 = vpack.c.b16 %v678, %v674
    %v811 = vpack.c.b16 %v679, %v675
    %v812 = vpack.c.b16 %v684, %v680
    %v813 = vpack.c.b16 %v685, %v681
    %v814 = vpack.c.b16 %v686, %v682
    %v815 = vpack.c.b16 %v687, %v683
    %v816 = vpack.c.b16 %v692, %v688
    %v817 = vpack.c.b16 %v693, %v689
    %v818 = vpack.c.b16 %v694, %v690
    %v819 = vpack.c.b16 %v695, %v691
    %v820 = vpack.c.b16 %v700, %v696
    %v821 = vpack.c.b16 %v701, %v697
    %v822 = vpack.c.b16 %v702, %v698
    %v823 = vpack.c.b16 %v703, %v699
    %v824 = vpack.c.b16 %v708, %v704
    %v825 = vpack.c.b16 %v709, %v705
    %v826 = vpack.c.b16 %v710, %v706
    %v827 = vpack.c.b16 %v711, %v707
    %v828 = vpack.c.b16 %v716, %v712
    %v829 = vpack.c.b16 %v717, %v713
    %v830 = vpack.c.b16 %v718, %v714
    %v831 = vpack.c.b16 %v719, %v715
    %v832 = vpack.c.b16 %v724, %v720
    %v833 = vpack.c.b16 %v725, %v721
    %v834 = vpack.c.b16 %v726, %v722
    %v835 = vpack.c.b16 %v727, %v723
    %v836 = vpack.c.b16 %v732, %v728
    %v837 = vpack.c.b16 %v733, %v729
    %v838 = vpack.c.b16 %v734, %v730
    %v839 = vpack.c.b16 %v735, %v731
    %v840 = vpack.c.b16 %v740, %v736
    %v841 = vpack.c.b16 %v741, %v737
    %v842 = vpack.c.b16 %v742, %v738
    %v843 = vpack.c.b16 %v743, %v739
    %v844 = vpack.c.b16 %v748, %v744
    %v845 = vpack.c.b16 %v749, %v745
    %v846 = vpack.c.b16 %v750, %v746
    %v847 = vpack.c.b16 %v751, %v747
    %944 = vmatprep.subr.bf16.mxu0 %v753
    %945 = vmatpush1.bf16.msra.mxu0 %v752
    %946 = vmatprep.subr.bf16.mxu0 %v757
    %947 = vmatpush1.bf16.msra.mxu0 %v756
    %948 = vmatprep.subr.bf16.mxu0 %v761
    %949 = vmatpush1.bf16.msra.mxu0 %v760
    %950 = vmatprep.subr.bf16.mxu0 %v765
    %951 = vmatpush1.bf16.msra.mxu0 %v764
    %952 = vmatprep.subr.bf16.mxu0 %v769
    %953 = vmatpush1.bf16.msra.mxu0 %v768
    %954 = vmatprep.subr.bf16.mxu0 %v773
    %955 = vmatpush1.bf16.msra.mxu0 %v772
    %956 = vmatprep.subr.bf16.mxu0 %v777
    %957 = vmatpush1.bf16.msra.mxu0 %v776
    %958 = vmatprep.subr.bf16.mxu0 %v781
    %959 = vmatpush1.bf16.msra.mxu0 %v780
    %960 = vmatprep.subr.bf16.mxu0 %v785
    %961 = vmatpush1.bf16.msra.mxu0 %v784
    %962 = vmatprep.subr.bf16.mxu0 %v789
    %963 = vmatpush1.bf16.msra.mxu0 %v788
    %964 = vmatprep.subr.bf16.mxu0 %v793
    %965 = vmatpush1.bf16.msra.mxu0 %v792
    %966 = vmatprep.subr.bf16.mxu0 %v797
    %967 = vmatpush1.bf16.msra.mxu0 %v796
    %968 = vmatprep.subr.bf16.mxu0 %v801
    %969 = vmatpush1.bf16.msra.mxu0 %v800
    %970 = vmatprep.subr.bf16.mxu0 %v805
    %971 = vmatpush1.bf16.msra.mxu0 %v804
    %972 = vmatprep.subr.bf16.mxu0 %v809
    %973 = vmatpush1.bf16.msra.mxu0 %v808
    %974 = vmatprep.subr.bf16.mxu0 %v813
    %975 = vmatpush1.bf16.msra.mxu0 %v812
    %976 = vmatprep.mubr.bf16.mxu0 %v344
    %977 = vmatmul.mubr.bf16.gmra.mrb[0].mxu0 %v343
    %v978 = vpop.f32.mrb[0].mxu0
    %v979 = vadd.f32 %v447, %v978
    %v980 = vpop.f32.mrb[0].mxu0
    %v981 = vadd.f32 %v451, %v980
    %v982 = vpop.f32.mrb[0].mxu0
    %v983 = vadd.f32 %v447, %v982
    %v984 = vpop.f32.mrb[0].mxu0
    %v985 = vadd.f32 %v451, %v984
    %986 = vdwg.mxu0
    %987 = vmatprep.subr.bf16.mxu0 %v817
    %988 = vmatpush1.bf16.msra.mxu0 %v816
    %989 = vmatprep.subr.bf16.mxu0 %v821
    %990 = vmatpush1.bf16.msra.mxu0 %v820
    %991 = vmatprep.subr.bf16.mxu0 %v825
    %992 = vmatpush1.bf16.msra.mxu0 %v824
    %993 = vmatprep.subr.bf16.mxu0 %v829
    %994 = vmatpush1.bf16.msra.mxu0 %v828
    %995 = vmatprep.subr.bf16.mxu0 %v833
    %996 = vmatpush1.bf16.msra.mxu0 %v832
    %997 = vmatprep.subr.bf16.mxu0 %v837
    %998 = vmatpush1.bf16.msra.mxu0 %v836
    %999 = vmatprep.subr.bf16.mxu0 %v841
    %1000 = vmatpush1.bf16.msra.mxu0 %v840
    %1001 = vmatprep.subr.bf16.mxu0 %v845
    %1002 = vmatpush1.bf16.msra.mxu0 %v844
    %1003 = vmatprep.subr.bf16.mxu0 0
    %1004 = vmatpush1.bf16.msra.mxu0 0
    %1005 = vmatprep.subr.bf16.mxu0 0
    %1006 = vmatpush1.bf16.msra.mxu0 0
    %1007 = vmatprep.subr.bf16.mxu0 0
    %1008 = vmatpush1.bf16.msra.mxu0 0
    %1009 = vmatprep.subr.bf16.mxu0 0
    %1010 = vmatpush1.bf16.msra.mxu0 0
    %1011 = vmatprep.subr.bf16.mxu0 0
    %1012 = vmatpush1.bf16.msra.mxu0 0
    %1013 = vmatprep.subr.bf16.mxu0 0
    %1014 = vmatpush1.bf16.msra.mxu0 0
    %1015 = vmatprep.subr.bf16.mxu0 0
    %1016 = vmatpush1.bf16.msra.mxu0 0
    %1017 = vmatprep.subr.bf16.mxu0 0
    %1018 = vmatpush1.bf16.msra.mxu0 0
    %1019 = vmatprep.mubr.bf16.mxu0 0
    %1020 = vmatmul.mubr.bf16.gmra.mrb[0].mxu0 %v345
    %v1021 = vpop.f32.mrb[0].mxu0
    %v1022 = vadd.f32 %v979, %v1021
    %v1023 = vpop.f32.mrb[0].mxu0
    %v1024 = vadd.f32 %v981, %v1023
    %v1025 = vpop.f32.mrb[0].mxu0
    %v1026 = vadd.f32 %v983, %v1025
    %v1027 = vpop.f32.mrb[0].mxu0
    %v1028 = vadd.f32 %v985, %v1027
    %1029 = vdwg.mxu0
    %1030 = vmatprep.subr.bf16.mxu0 %v755
    %1031 = vmatpush1.bf16.msra.mxu0 %v754
    %1032 = vmatprep.subr.bf16.mxu0 %v759
    %1033 = vmatpush1.bf16.msra.mxu0 %v758
    %1034 = vmatprep.subr.bf16.mxu0 %v763
    %1035 = vmatpush1.bf16.msra.mxu0 %v762
    %1036 = vmatprep.subr.bf16.mxu0 %v767
    %1037 = vmatpush1.bf16.msra.mxu0 %v766
    %1038 = vmatprep.subr.bf16.mxu0 %v771
    %1039 = vmatpush1.bf16.msra.mxu0 %v770
    %1040 = vmatprep.subr.bf16.mxu0 %v775
    %1041 = vmatpush1.bf16.msra.mxu0 %v774
    %1042 = vmatprep.subr.bf16.mxu0 %v779
    %1043 = vmatpush1.bf16.msra.mxu0 %v778
    %1044 = vmatprep.subr.bf16.mxu0 %v783
    %1045 = vmatpush1.bf16.msra.mxu0 %v782
    %1046 = vmatprep.subr.bf16.mxu0 %v787
    %1047 = vmatpush1.bf16.msra.mxu0 %v786
    %1048 = vmatprep.subr.bf16.mxu0 %v791
    %1049 = vmatpush1.bf16.msra.mxu0 %v790
    %1050 = vmatprep.subr.bf16.mxu0 %v795
    %1051 = vmatpush1.bf16.msra.mxu0 %v794
    %1052 = vmatprep.subr.bf16.mxu0 %v799
    %1053 = vmatpush1.bf16.msra.mxu0 %v798
    %1054 = vmatprep.subr.bf16.mxu0 %v803
    %1055 = vmatpush1.bf16.msra.mxu0 %v802
    %1056 = vmatprep.subr.bf16.mxu0 %v807
    %1057 = vmatpush1.bf16.msra.mxu0 %v806
    %1058 = vmatprep.subr.bf16.mxu0 %v811
    %1059 = vmatpush1.bf16.msra.mxu0 %v810
    %1060 = vmatprep.subr.bf16.mxu0 %v815
    %1061 = vmatpush1.bf16.msra.mxu0 %v814
    %1062 = vmatprep.mubr.bf16.mxu0 %v344
    %1063 = vmatmul.mubr.bf16.gmra.mrb[0].mxu0 %v343
    %v1064 = vpop.f32.mrb[0].mxu0
    %v1065 = vadd.f32 %v455, %v1064
    %v1066 = vpop.f32.mrb[0].mxu0
    %v1067 = vadd.f32 %v459, %v1066
    %v1068 = vpop.f32.mrb[0].mxu0
    %v1069 = vadd.f32 %v455, %v1068
    %v1070 = vpop.f32.mrb[0].mxu0
    %v1071 = vadd.f32 %v459, %v1070
    %1072 = vdwg.mxu0
    %1073 = vmatprep.subr.bf16.mxu0 %v819
    %1074 = vmatpush1.bf16.msra.mxu0 %v818
    %1075 = vmatprep.subr.bf16.mxu0 %v823
    %1076 = vmatpush1.bf16.msra.mxu0 %v822
    %1077 = vmatprep.subr.bf16.mxu0 %v827
    %1078 = vmatpush1.bf16.msra.mxu0 %v826
    %1079 = vmatprep.subr.bf16.mxu0 %v831
    %1080 = vmatpush1.bf16.msra.mxu0 %v830
    %1081 = vmatprep.subr.bf16.mxu0 %v835
    %1082 = vmatpush1.bf16.msra.mxu0 %v834
    %1083 = vmatprep.subr.bf16.mxu0 %v839
    %1084 = vmatpush1.bf16.msra.mxu0 %v838
    %1085 = vmatprep.subr.bf16.mxu0 %v843
    %1086 = vmatpush1.bf16.msra.mxu0 %v842
    %1087 = vmatprep.subr.bf16.mxu0 %v847
    %1088 = vmatpush1.bf16.msra.mxu0 %v846
    %1089 = vmatprep.subr.bf16.mxu0 0
    %1090 = vmatpush1.bf16.msra.mxu0 0
    %1091 = vmatprep.subr.bf16.mxu0 0
    %1092 = vmatpush1.bf16.msra.mxu0 0
    %1093 = vmatprep.subr.bf16.mxu0 0
    %1094 = vmatpush1.bf16.msra.mxu0 0
    %1095 = vmatprep.subr.bf16.mxu0 0
    %1096 = vmatpush1.bf16.msra.mxu0 0
    %1097 = vmatprep.subr.bf16.mxu0 0
    %1098 = vmatpush1.bf16.msra.mxu0 0
    %1099 = vmatprep.subr.bf16.mxu0 0
    %1100 = vmatpush1.bf16.msra.mxu0 0
    %1101 = vmatprep.subr.bf16.mxu0 0
    %1102 = vmatpush1.bf16.msra.mxu0 0
    %1103 = vmatprep.subr.bf16.mxu0 0
    %1104 = vmatpush1.bf16.msra.mxu0 0
    %1105 = vmatprep.mubr.bf16.mxu0 0
    %1106 = vmatmul.mubr.bf16.gmra.mrb[0].mxu0 %v345
    %v1107 = vpop.f32.mrb[0].mxu0
    %v1108 = vadd.f32 %v1065, %v1107
    %v1109 = vpop.f32.mrb[0].mxu0
    %v1110 = vadd.f32 %v1067, %v1109
    %v1111 = vpop.f32.mrb[0].mxu0
    %v1112 = vadd.f32 %v1069, %v1111
    %v1113 = vpop.f32.mrb[0].mxu0
    %v1114 = vadd.f32 %v1071, %v1113
    %1115 = vdwg.mxu0
    %v1116 = vtanh.pop %v1022
    %v1117 = vtanh.pop %v1024
    %v1118 = vtanh.pop %v1108
    %v1119 = vtanh.pop %v1110
    %v1120 = vtanh.pop %v1026
    %v1121 = vtanh.pop %v1028
    %v1122 = vtanh.pop %v1112
    %v1123 = vtanh.pop %v1114
    %v1124 = vpack.c.bf16 %v1120, %v1116
    %v1125 = vpack.c.bf16 %v1121, %v1117
    %v1126 = vpack.c.bf16 %v1122, %v1118
    %v1127 = vpack.c.bf16 %v1123, %v1119
    %v1128 = vld [vmem:[#allocation6] sm:$0xff]
    %v1129 = vld [vmem:[#allocation6 + $0x8] sm:$0xff]
    %v1130 = vld [vmem:[#allocation6 + $0x10] sm:$0xff]
    %v1131 = vld [vmem:[#allocation6 + $0x18] sm:$0xff]
    %v1132 = vld [vmem:[#allocation6 + $0x20] sm:$0xff]
    %v1133 = vld [vmem:[#allocation6 + $0x28] sm:$0xff]
    %v1134 = vld [vmem:[#allocation6 + $0x30] sm:$0xff]
    %v1135 = vld [vmem:[#allocation6 + $0x38] sm:$0xff]
    %v1136 = vld [vmem:[#allocation6 + $0x40] sm:$0xff]
    %v1137 = vld [vmem:[#allocation6 + $0x48] sm:$0xff]
    %v1138 = vld [vmem:[#allocation6 + $0x50] sm:$0xff]
    %v1139 = vld [vmem:[#allocation6 + $0x58] sm:$0xff]
    %v1140 = vld [vmem:[#allocation6 + $0x60] sm:$0xff]
    %v1141 = vld [vmem:[#allocation6 + $0x68] sm:$0xff]
    %v1142 = vld [vmem:[#allocation6 + $0x70] sm:$0xff]
    %v1143 = vld [vmem:[#allocation6 + $0x78] sm:$0xff]
    %v1144 = vld [vmem:[#allocation6 + $0x80] sm:$0xff]
    %v1145 = vld [vmem:[#allocation6 + $0x88] sm:$0xff]
    %v1146 = vld [vmem:[#allocation6 + $0x90] sm:$0xff]
    %v1147 = vld [vmem:[#allocation6 + $0x98] sm:$0xff]
    %v1148 = vld [vmem:[#allocation6 + $0xa0] sm:$0xff]
    %v1149 = vld [vmem:[#allocation6 + $0xa8] sm:$0xff]
    %v1150 = vld [vmem:[#allocation6 + $0xb0] sm:$0xff]
    %v1151 = vld [vmem:[#allocation6 + $0xb8] sm:$0xff]
    %v1152 = vld [vmem:[#allocation6 + $0xc0] sm:$0xff]
    %v1153 = vld [vmem:[#allocation6 + $0xc8] sm:$0xff]
    %v1154 = vld [vmem:[#allocation6 + $0xd0] sm:$0xff]
    %v1155 = vld [vmem:[#allocation6 + $0xd8] sm:$0xff]
    %v1156 = vld [vmem:[#allocation6 + $0xe0] sm:$0xff]
    %v1157 = vld [vmem:[#allocation6 + $0xe8] sm:$0xff]
    %v1158 = vld [vmem:[#allocation6 + $0xf0] sm:$0xff]
    %v1159 = vld [vmem:[#allocation6 + $0xf8] sm:$0xff]
    %v1160 = vld [vmem:[#allocation6 + $0x100] sm:$0xff]
    %v1161 = vld [vmem:[#allocation6 + $0x108] sm:$0xff]
    %v1162 = vld [vmem:[#allocation6 + $0x110] sm:$0xff]
    %v1163 = vld [vmem:[#allocation6 + $0x118] sm:$0xff]
    %v1164 = vld [vmem:[#allocation6 + $0x120] sm:$0xff]
    %v1165 = vld [vmem:[#allocation6 + $0x128] sm:$0xff]
    %v1166 = vld [vmem:[#allocation6 + $0x130] sm:$0xff]
    %v1167 = vld [vmem:[#allocation6 + $0x138] sm:$0xff]
    %v1168 = vld [vmem:[#allocation6 + $0x140] sm:$0xff]
    %v1169 = vld [vmem:[#allocation6 + $0x148] sm:$0xff]
    %v1170 = vld [vmem:[#allocation6 + $0x150] sm:$0xff]
    %v1171 = vld [vmem:[#allocation6 + $0x158] sm:$0xff]
    %v1172 = vld [vmem:[#allocation6 + $0x160] sm:$0xff]
    %v1173 = vld [vmem:[#allocation6 + $0x168] sm:$0xff]
    %v1174 = vld [vmem:[#allocation6 + $0x170] sm:$0xff]
    %v1175 = vld [vmem:[#allocation6 + $0x178] sm:$0xff]
    %v1176 = vld [vmem:[#allocation6 + $0x180] sm:$0xff]
    %v1177 = vld [vmem:[#allocation6 + $0x188] sm:$0xff]
    %v1178 = vld [vmem:[#allocation6 + $0x190] sm:$0xff]
    %v1179 = vld [vmem:[#allocation6 + $0x198] sm:$0xff]
    %v1180 = vld [vmem:[#allocation6 + $0x1a0] sm:$0xff]
    %v1181 = vld [vmem:[#allocation6 + $0x1a8] sm:$0xff]
    %v1182 = vld [vmem:[#allocation6 + $0x1b0] sm:$0xff]
    %v1183 = vld [vmem:[#allocation6 + $0x1b8] sm:$0xff]
    %v1184 = vld [vmem:[#allocation6 + $0x1c0] sm:$0xff]
    %v1185 = vld [vmem:[#allocation6 + $0x1c8] sm:$0xff]
    %v1186 = vld [vmem:[#allocation6 + $0x1d0] sm:$0xff]
    %v1187 = vld [vmem:[#allocation6 + $0x1d8] sm:$0xff]
    %v1188 = vld [vmem:[#allocation6 + $0x1e0] sm:$0xff]
    %v1189 = vld [vmem:[#allocation6 + $0x1e8] sm:$0xff]
    %v1190 = vld [vmem:[#allocation6 + $0x1f0] sm:$0xff]
    %v1191 = vld [vmem:[#allocation6 + $0x1f8] sm:$0xff]
    %v1192 = vld [vmem:[#allocation6 + $0x200] sm:$0xff]
    %v1193 = vld [vmem:[#allocation6 + $0x208] sm:$0xff]
    %v1194 = vld [vmem:[#allocation6 + $0x210] sm:$0xff]
    %v1195 = vld [vmem:[#allocation6 + $0x218] sm:$0xff]
    %v1196 = vld [vmem:[#allocation6 + $0x220] sm:$0xff]
    %v1197 = vld [vmem:[#allocation6 + $0x228] sm:$0xff]
    %v1198 = vld [vmem:[#allocation6 + $0x230] sm:$0xff]
    %v1199 = vld [vmem:[#allocation6 + $0x238] sm:$0xff]
    %v1200 = vld [vmem:[#allocation6 + $0x240] sm:$0xff]
    %v1201 = vld [vmem:[#allocation6 + $0x248] sm:$0xff]
    %v1202 = vld [vmem:[#allocation6 + $0x250] sm:$0xff]
    %v1203 = vld [vmem:[#allocation6 + $0x258] sm:$0xff]
    %v1204 = vld [vmem:[#allocation6 + $0x260] sm:$0xff]
    %v1205 = vld [vmem:[#allocation6 + $0x268] sm:$0xff]
    %v1206 = vld [vmem:[#allocation6 + $0x270] sm:$0xff]
    %v1207 = vld [vmem:[#allocation6 + $0x278] sm:$0xff]
    %v1208 = vld [vmem:[#allocation6 + $0x280] sm:$0xff]
    %v1209 = vld [vmem:[#allocation6 + $0x288] sm:$0xff]
    %v1210 = vld [vmem:[#allocation6 + $0x290] sm:$0xff]
    %v1211 = vld [vmem:[#allocation6 + $0x298] sm:$0xff]
    %v1212 = vld [vmem:[#allocation6 + $0x2a0] sm:$0xff]
    %v1213 = vld [vmem:[#allocation6 + $0x2a8] sm:$0xff]
    %v1214 = vld [vmem:[#allocation6 + $0x2b0] sm:$0xff]
    %v1215 = vld [vmem:[#allocation6 + $0x2b8] sm:$0xff]
    %v1216 = vld [vmem:[#allocation6 + $0x2c0] sm:$0xff]
    %v1217 = vld [vmem:[#allocation6 + $0x2c8] sm:$0xff]
    %v1218 = vld [vmem:[#allocation6 + $0x2d0] sm:$0xff]
    %v1219 = vld [vmem:[#allocation6 + $0x2d8] sm:$0xff]
    %v1220 = vld [vmem:[#allocation6 + $0x2e0] sm:$0xff]
    %v1221 = vld [vmem:[#allocation6 + $0x2e8] sm:$0xff]
    %v1222 = vld [vmem:[#allocation6 + $0x2f0] sm:$0xff]
    %v1223 = vld [vmem:[#allocation6 + $0x2f8] sm:$0xff]
    %v1224 = vld [vmem:[#allocation6 + $0x300] sm:$0xff]
    %v1225 = vld [vmem:[#allocation6 + $0x308] sm:$0xff]
    %v1226 = vld [vmem:[#allocation6 + $0x310] sm:$0xff]
    %v1227 = vld [vmem:[#allocation6 + $0x318] sm:$0xff]
    %v1228 = vld [vmem:[#allocation6 + $0x320] sm:$0xff]
    %v1229 = vld [vmem:[#allocation6 + $0x328] sm:$0xff]
    %v1230 = vld [vmem:[#allocation6 + $0x330] sm:$0xff]
    %v1231 = vld [vmem:[#allocation6 + $0x338] sm:$0xff]
    %v1232 = vld [vmem:[#allocation6 + $0x340] sm:$0xff]
    %v1233 = vld [vmem:[#allocation6 + $0x348] sm:$0xff]
    %v1234 = vld [vmem:[#allocation6 + $0x350] sm:$0xff]
    %v1235 = vld [vmem:[#allocation6 + $0x358] sm:$0xff]
    %v1236 = vld [vmem:[#allocation6 + $0x360] sm:$0xff]
    %v1237 = vld [vmem:[#allocation6 + $0x368] sm:$0xff]
    %v1238 = vld [vmem:[#allocation6 + $0x370] sm:$0xff]
    %v1239 = vld [vmem:[#allocation6 + $0x378] sm:$0xff]
    %v1240 = vld [vmem:[#allocation6 + $0x380] sm:$0xff]
    %v1241 = vld [vmem:[#allocation6 + $0x388] sm:$0xff]
    %v1242 = vld [vmem:[#allocation6 + $0x390] sm:$0xff]
    %v1243 = vld [vmem:[#allocation6 + $0x398] sm:$0xff]
    %v1244 = vld [vmem:[#allocation6 + $0x3a0] sm:$0xff]
    %v1245 = vld [vmem:[#allocation6 + $0x3a8] sm:$0xff]
    %v1246 = vld [vmem:[#allocation6 + $0x3b0] sm:$0xff]
    %v1247 = vld [vmem:[#allocation6 + $0x3b8] sm:$0xff]
    %v1248 = vld [vmem:[#allocation6 + $0x3c0] sm:$0xff]
    %v1249 = vld [vmem:[#allocation6 + $0x3c8] sm:$0xff]
    %v1250 = vld [vmem:[#allocation6 + $0x3d0] sm:$0xff]
    %v1251 = vld [vmem:[#allocation6 + $0x3d8] sm:$0xff]
    %v1252 = vld [vmem:[#allocation6 + $0x3e0] sm:$0xff]
    %v1253 = vld [vmem:[#allocation6 + $0x3e8] sm:$0xff]
    %v1254 = vld [vmem:[#allocation6 + $0x3f0] sm:$0xff]
    %v1255 = vld [vmem:[#allocation6 + $0x3f8] sm:$0xff]
    %v1256 = vld [vmem:[%s6] sm:$0xf]
    %v1258 = vlaneseq
    %v1259 = vshrl.u32 %v1258, 7
    %v1260 = vsub.s32 0, %v1259
    %v1261 = vrot.slane %v1256, %v1260
    %v1262 = vlaneseq
    %v1263 = vshrl.u32 %v1262, 7
    %v1264 = vsub.s32 1, %v1263
    %v1265 = vrot.slane %v1256, %v1264
    %v1266 = vlaneseq
    %v1267 = vshrl.u32 %v1266, 7
    %v1268 = vsub.s32 2, %v1267
    %v1269 = vrot.slane %v1256, %v1268
    %v1270 = vlaneseq
    %v1271 = vshrl.u32 %v1270, 7
    %v1272 = vsub.s32 3, %v1271
    %v1273 = vrot.slane %v1256, %v1272
    %v1406 = vunpack.c.l.b16 %v1128
    %v1407 = vunpack.c.h.b16 %v1128
    %v1408 = vunpack.c.l.b16 %v1129
    %v1409 = vunpack.c.h.b16 %v1129
    %v1410 = vunpack.c.l.b16 %v1130
    %v1411 = vunpack.c.h.b16 %v1130
    %v1412 = vunpack.c.l.b16 %v1131
    %v1413 = vunpack.c.h.b16 %v1131
    %v1414 = vunpack.c.l.b16 %v1132
    %v1415 = vunpack.c.h.b16 %v1132
    %v1416 = vunpack.c.l.b16 %v1133
    %v1417 = vunpack.c.h.b16 %v1133
    %v1418 = vunpack.c.l.b16 %v1134
    %v1419 = vunpack.c.h.b16 %v1134
    %v1420 = vunpack.c.l.b16 %v1135
    %v1421 = vunpack.c.h.b16 %v1135
    %v1422 = vunpack.c.l.b16 %v1136
    %v1423 = vunpack.c.h.b16 %v1136
    %v1424 = vunpack.c.l.b16 %v1137
    %v1425 = vunpack.c.h.b16 %v1137
    %v1426 = vunpack.c.l.b16 %v1138
    %v1427 = vunpack.c.h.b16 %v1138
    %v1428 = vunpack.c.l.b16 %v1139
    %v1429 = vunpack.c.h.b16 %v1139
    %v1430 = vunpack.c.l.b16 %v1140
    %v1431 = vunpack.c.h.b16 %v1140
    %v1432 = vunpack.c.l.b16 %v1141
    %v1433 = vunpack.c.h.b16 %v1141
    %v1434 = vunpack.c.l.b16 %v1142
    %v1435 = vunpack.c.h.b16 %v1142
    %v1436 = vunpack.c.l.b16 %v1143
    %v1437 = vunpack.c.h.b16 %v1143
    %v1438 = vunpack.c.l.b16 %v1144
    %v1439 = vunpack.c.h.b16 %v1144
    %v1440 = vunpack.c.l.b16 %v1145
    %v1441 = vunpack.c.h.b16 %v1145
    %v1442 = vunpack.c.l.b16 %v1146
    %v1443 = vunpack.c.h.b16 %v1146
    %v1444 = vunpack.c.l.b16 %v1147
    %v1445 = vunpack.c.h.b16 %v1147
    %v1446 = vunpack.c.l.b16 %v1148
    %v1447 = vunpack.c.h.b16 %v1148
    %v1448 = vunpack.c.l.b16 %v1149
    %v1449 = vunpack.c.h.b16 %v1149
    %v1450 = vunpack.c.l.b16 %v1150
    %v1451 = vunpack.c.h.b16 %v1150
    %v1452 = vunpack.c.l.b16 %v1151
    %v1453 = vunpack.c.h.b16 %v1151
    %v1454 = vunpack.c.l.b16 %v1152
    %v1455 = vunpack.c.h.b16 %v1152
    %v1456 = vunpack.c.l.b16 %v1153
    %v1457 = vunpack.c.h.b16 %v1153
    %v1458 = vunpack.c.l.b16 %v1154
    %v1459 = vunpack.c.h.b16 %v1154
    %v1460 = vunpack.c.l.b16 %v1155
    %v1461 = vunpack.c.h.b16 %v1155
    %v1462 = vunpack.c.l.b16 %v1156
    %v1463 = vunpack.c.h.b16 %v1156
    %v1464 = vunpack.c.l.b16 %v1157
    %v1465 = vunpack.c.h.b16 %v1157
    %v1466 = vunpack.c.l.b16 %v1158
    %v1467 = vunpack.c.h.b16 %v1158
    %v1468 = vunpack.c.l.b16 %v1159
    %v1469 = vunpack.c.h.b16 %v1159
    %v1470 = vunpack.c.l.b16 %v1160
    %v1471 = vunpack.c.h.b16 %v1160
    %v1472 = vunpack.c.l.b16 %v1161
    %v1473 = vunpack.c.h.b16 %v1161
    %v1474 = vunpack.c.l.b16 %v1162
    %v1475 = vunpack.c.h.b16 %v1162
    %v1476 = vunpack.c.l.b16 %v1163
    %v1477 = vunpack.c.h.b16 %v1163
    %v1478 = vunpack.c.l.b16 %v1164
    %v1479 = vunpack.c.h.b16 %v1164
    %v1480 = vunpack.c.l.b16 %v1165
    %v1481 = vunpack.c.h.b16 %v1165
    %v1482 = vunpack.c.l.b16 %v1166
    %v1483 = vunpack.c.h.b16 %v1166
    %v1484 = vunpack.c.l.b16 %v1167
    %v1485 = vunpack.c.h.b16 %v1167
    %v1486 = vunpack.c.l.b16 %v1168
    %v1487 = vunpack.c.h.b16 %v1168
    %v1488 = vunpack.c.l.b16 %v1169
    %v1489 = vunpack.c.h.b16 %v1169
    %v1490 = vunpack.c.l.b16 %v1170
    %v1491 = vunpack.c.h.b16 %v1170
    %v1492 = vunpack.c.l.b16 %v1171
    %v1493 = vunpack.c.h.b16 %v1171
    %v1494 = vunpack.c.l.b16 %v1172
    %v1495 = vunpack.c.h.b16 %v1172
    %v1496 = vunpack.c.l.b16 %v1173
    %v1497 = vunpack.c.h.b16 %v1173
    %v1498 = vunpack.c.l.b16 %v1174
    %v1499 = vunpack.c.h.b16 %v1174
    %v1500 = vunpack.c.l.b16 %v1175
    %v1501 = vunpack.c.h.b16 %v1175
    %v1502 = vunpack.c.l.b16 %v1176
    %v1503 = vunpack.c.h.b16 %v1176
    %v1504 = vunpack.c.l.b16 %v1177
    %v1505 = vunpack.c.h.b16 %v1177
    %v1506 = vunpack.c.l.b16 %v1178
    %v1507 = vunpack.c.h.b16 %v1178
    %v1508 = vunpack.c.l.b16 %v1179
    %v1509 = vunpack.c.h.b16 %v1179
    %v1510 = vunpack.c.l.b16 %v1180
    %v1511 = vunpack.c.h.b16 %v1180
    %v1512 = vunpack.c.l.b16 %v1181
    %v1513 = vunpack.c.h.b16 %v1181
    %v1514 = vunpack.c.l.b16 %v1182
    %v1515 = vunpack.c.h.b16 %v1182
    %v1516 = vunpack.c.l.b16 %v1183
    %v1517 = vunpack.c.h.b16 %v1183
    %v1518 = vunpack.c.l.b16 %v1184
    %v1519 = vunpack.c.h.b16 %v1184
    %v1520 = vunpack.c.l.b16 %v1185
    %v1521 = vunpack.c.h.b16 %v1185
    %v1522 = vunpack.c.l.b16 %v1186
    %v1523 = vunpack.c.h.b16 %v1186
    %v1524 = vunpack.c.l.b16 %v1187
    %v1525 = vunpack.c.h.b16 %v1187
    %v1526 = vunpack.c.l.b16 %v1188
    %v1527 = vunpack.c.h.b16 %v1188
    %v1528 = vunpack.c.l.b16 %v1189
    %v1529 = vunpack.c.h.b16 %v1189
    %v1530 = vunpack.c.l.b16 %v1190
    %v1531 = vunpack.c.h.b16 %v1190
    %v1532 = vunpack.c.l.b16 %v1191
    %v1533 = vunpack.c.h.b16 %v1191
    %v1534 = vunpack.c.l.b16 %v1192
    %v1535 = vunpack.c.h.b16 %v1192
    %v1536 = vunpack.c.l.b16 %v1193
    %v1537 = vunpack.c.h.b16 %v1193
    %v1538 = vunpack.c.l.b16 %v1194
    %v1539 = vunpack.c.h.b16 %v1194
    %v1540 = vunpack.c.l.b16 %v1195
    %v1541 = vunpack.c.h.b16 %v1195
    %v1542 = vunpack.c.l.b16 %v1196
    %v1543 = vunpack.c.h.b16 %v1196
    %v1544 = vunpack.c.l.b16 %v1197
    %v1545 = vunpack.c.h.b16 %v1197
    %v1546 = vunpack.c.l.b16 %v1198
    %v1547 = vunpack.c.h.b16 %v1198
    %v1548 = vunpack.c.l.b16 %v1199
    %v1549 = vunpack.c.h.b16 %v1199
    %v1550 = vunpack.c.l.b16 %v1200
    %v1551 = vunpack.c.h.b16 %v1200
    %v1552 = vunpack.c.l.b16 %v1201
    %v1553 = vunpack.c.h.b16 %v1201
    %v1554 = vunpack.c.l.b16 %v1202
    %v1555 = vunpack.c.h.b16 %v1202
    %v1556 = vunpack.c.l.b16 %v1203
    %v1557 = vunpack.c.h.b16 %v1203
    %v1558 = vunpack.c.l.b16 %v1204
    %v1559 = vunpack.c.h.b16 %v1204
    %v1560 = vunpack.c.l.b16 %v1205
    %v1561 = vunpack.c.h.b16 %v1205
    %v1562 = vunpack.c.l.b16 %v1206
    %v1563 = vunpack.c.h.b16 %v1206
    %v1564 = vunpack.c.l.b16 %v1207
    %v1565 = vunpack.c.h.b16 %v1207
    %v1566 = vunpack.c.l.b16 %v1208
    %v1567 = vunpack.c.h.b16 %v1208
    %v1568 = vunpack.c.l.b16 %v1209
    %v1569 = vunpack.c.h.b16 %v1209
    %v1570 = vunpack.c.l.b16 %v1210
    %v1571 = vunpack.c.h.b16 %v1210
    %v1572 = vunpack.c.l.b16 %v1211
    %v1573 = vunpack.c.h.b16 %v1211
    %v1574 = vunpack.c.l.b16 %v1212
    %v1575 = vunpack.c.h.b16 %v1212
    %v1576 = vunpack.c.l.b16 %v1213
    %v1577 = vunpack.c.h.b16 %v1213
    %v1578 = vunpack.c.l.b16 %v1214
    %v1579 = vunpack.c.h.b16 %v1214
    %v1580 = vunpack.c.l.b16 %v1215
    %v1581 = vunpack.c.h.b16 %v1215
    %v1582 = vunpack.c.l.b16 %v1216
    %v1583 = vunpack.c.h.b16 %v1216
    %v1584 = vunpack.c.l.b16 %v1217
    %v1585 = vunpack.c.h.b16 %v1217
    %v1586 = vunpack.c.l.b16 %v1218
    %v1587 = vunpack.c.h.b16 %v1218
    %v1588 = vunpack.c.l.b16 %v1219
    %v1589 = vunpack.c.h.b16 %v1219
    %v1590 = vunpack.c.l.b16 %v1220
    %v1591 = vunpack.c.h.b16 %v1220
    %v1592 = vunpack.c.l.b16 %v1221
    %v1593 = vunpack.c.h.b16 %v1221
    %v1594 = vunpack.c.l.b16 %v1222
    %v1595 = vunpack.c.h.b16 %v1222
    %v1596 = vunpack.c.l.b16 %v1223
    %v1597 = vunpack.c.h.b16 %v1223
    %v1598 = vunpack.c.l.b16 %v1224
    %v1599 = vunpack.c.h.b16 %v1224
    %v1600 = vunpack.c.l.b16 %v1225
    %v1601 = vunpack.c.h.b16 %v1225
    %v1602 = vunpack.c.l.b16 %v1226
    %v1603 = vunpack.c.h.b16 %v1226
    %v1604 = vunpack.c.l.b16 %v1227
    %v1605 = vunpack.c.h.b16 %v1227
    %v1606 = vunpack.c.l.b16 %v1228
    %v1607 = vunpack.c.h.b16 %v1228
    %v1608 = vunpack.c.l.b16 %v1229
    %v1609 = vunpack.c.h.b16 %v1229
    %v1610 = vunpack.c.l.b16 %v1230
    %v1611 = vunpack.c.h.b16 %v1230
    %v1612 = vunpack.c.l.b16 %v1231
    %v1613 = vunpack.c.h.b16 %v1231
    %v1614 = vunpack.c.l.b16 %v1232
    %v1615 = vunpack.c.h.b16 %v1232
    %v1616 = vunpack.c.l.b16 %v1233
    %v1617 = vunpack.c.h.b16 %v1233
    %v1618 = vunpack.c.l.b16 %v1234
    %v1619 = vunpack.c.h.b16 %v1234
    %v1620 = vunpack.c.l.b16 %v1235
    %v1621 = vunpack.c.h.b16 %v1235
    %v1622 = vunpack.c.l.b16 %v1236
    %v1623 = vunpack.c.h.b16 %v1236
    %v1624 = vunpack.c.l.b16 %v1237
    %v1625 = vunpack.c.h.b16 %v1237
    %v1626 = vunpack.c.l.b16 %v1238
    %v1627 = vunpack.c.h.b16 %v1238
    %v1628 = vunpack.c.l.b16 %v1239
    %v1629 = vunpack.c.h.b16 %v1239
    %v1630 = vunpack.c.l.b16 %v1240
    %v1631 = vunpack.c.h.b16 %v1240
    %v1632 = vunpack.c.l.b16 %v1241
    %v1633 = vunpack.c.h.b16 %v1241
    %v1634 = vunpack.c.l.b16 %v1242
    %v1635 = vunpack.c.h.b16 %v1242
    %v1636 = vunpack.c.l.b16 %v1243
    %v1637 = vunpack.c.h.b16 %v1243
    %v1638 = vunpack.c.l.b16 %v1244
    %v1639 = vunpack.c.h.b16 %v1244
    %v1640 = vunpack.c.l.b16 %v1245
    %v1641 = vunpack.c.h.b16 %v1245
    %v1642 = vunpack.c.l.b16 %v1246
    %v1643 = vunpack.c.h.b16 %v1246
    %v1644 = vunpack.c.l.b16 %v1247
    %v1645 = vunpack.c.h.b16 %v1247
    %v1646 = vunpack.c.l.b16 %v1248
    %v1647 = vunpack.c.h.b16 %v1248
    %v1648 = vunpack.c.l.b16 %v1249
    %v1649 = vunpack.c.h.b16 %v1249
    %v1650 = vunpack.c.l.b16 %v1250
    %v1651 = vunpack.c.h.b16 %v1250
    %v1652 = vunpack.c.l.b16 %v1251
    %v1653 = vunpack.c.h.b16 %v1251
    %v1654 = vunpack.c.l.b16 %v1252
    %v1655 = vunpack.c.h.b16 %v1252
    %v1656 = vunpack.c.l.b16 %v1253
    %v1657 = vunpack.c.h.b16 %v1253
    %v1658 = vunpack.c.l.b16 %v1254
    %v1659 = vunpack.c.h.b16 %v1254
    %v1660 = vunpack.c.l.b16 %v1255
    %v1661 = vunpack.c.h.b16 %v1255
    %v1662 = vpack.c.b16 %v1410, %v1406
    %v1663 = vpack.c.b16 %v1411, %v1407
    %v1664 = vpack.c.b16 %v1412, %v1408
    %v1665 = vpack.c.b16 %v1413, %v1409
    %v1666 = vpack.c.b16 %v1418, %v1414
    %v1667 = vpack.c.b16 %v1419, %v1415
    %v1668 = vpack.c.b16 %v1420, %v1416
    %v1669 = vpack.c.b16 %v1421, %v1417
    %v1670 = vpack.c.b16 %v1426, %v1422
    %v1671 = vpack.c.b16 %v1427, %v1423
    %v1672 = vpack.c.b16 %v1428, %v1424
    %v1673 = vpack.c.b16 %v1429, %v1425
    %v1674 = vpack.c.b16 %v1434, %v1430
    %v1675 = vpack.c.b16 %v1435, %v1431
    %v1676 = vpack.c.b16 %v1436, %v1432
    %v1677 = vpack.c.b16 %v1437, %v1433
    %v1678 = vpack.c.b16 %v1442, %v1438
    %v1679 = vpack.c.b16 %v1443, %v1439
    %v1680 = vpack.c.b16 %v1444, %v1440
    %v1681 = vpack.c.b16 %v1445, %v1441
    %v1682 = vpack.c.b16 %v1450, %v1446
    %v1683 = vpack.c.b16 %v1451, %v1447
    %v1684 = vpack.c.b16 %v1452, %v1448
    %v1685 = vpack.c.b16 %v1453, %v1449
    %v1686 = vpack.c.b16 %v1458, %v1454
    %v1687 = vpack.c.b16 %v1459, %v1455
    %v1688 = vpack.c.b16 %v1460, %v1456
    %v1689 = vpack.c.b16 %v1461, %v1457
    %v1690 = vpack.c.b16 %v1466, %v1462
    %v1691 = vpack.c.b16 %v1467, %v1463
    %v1692 = vpack.c.b16 %v1468, %v1464
    %v1693 = vpack.c.b16 %v1469, %v1465
    %v1694 = vpack.c.b16 %v1474, %v1470
    %v1695 = vpack.c.b16 %v1475, %v1471
    %v1696 = vpack.c.b16 %v1476, %v1472
    %v1697 = vpack.c.b16 %v1477, %v1473
    %v1698 = vpack.c.b16 %v1482, %v1478
    %v1699 = vpack.c.b16 %v1483, %v1479
    %v1700 = vpack.c.b16 %v1484, %v1480
    %v1701 = vpack.c.b16 %v1485, %v1481
    %v1702 = vpack.c.b16 %v1490, %v1486
    %v1703 = vpack.c.b16 %v1491, %v1487
    %v1704 = vpack.c.b16 %v1492, %v1488
    %v1705 = vpack.c.b16 %v1493, %v1489
    %v1706 = vpack.c.b16 %v1498, %v1494
    %v1707 = vpack.c.b16 %v1499, %v1495
    %v1708 = vpack.c.b16 %v1500, %v1496
    %v1709 = vpack.c.b16 %v1501, %v1497
    %v1710 = vpack.c.b16 %v1506, %v1502
    %v1711 = vpack.c.b16 %v1507, %v1503
    %v1712 = vpack.c.b16 %v1508, %v1504
    %v1713 = vpack.c.b16 %v1509, %v1505
    %v1714 = vpack.c.b16 %v1514, %v1510
    %v1715 = vpack.c.b16 %v1515, %v1511
    %v1716 = vpack.c.b16 %v1516, %v1512
    %v1717 = vpack.c.b16 %v1517, %v1513
    %v1718 = vpack.c.b16 %v1522, %v1518
    %v1719 = vpack.c.b16 %v1523, %v1519
    %v1720 = vpack.c.b16 %v1524, %v1520
    %v1721 = vpack.c.b16 %v1525, %v1521
    %v1722 = vpack.c.b16 %v1530, %v1526
    %v1723 = vpack.c.b16 %v1531, %v1527
    %v1724 = vpack.c.b16 %v1532, %v1528
    %v1725 = vpack.c.b16 %v1533, %v1529
    %v1726 = vpack.c.b16 %v1538, %v1534
    %v1727 = vpack.c.b16 %v1539, %v1535
    %v1728 = vpack.c.b16 %v1540, %v1536
    %v1729 = vpack.c.b16 %v1541, %v1537
    %v1730 = vpack.c.b16 %v1546, %v1542
    %v1731 = vpack.c.b16 %v1547, %v1543
    %v1732 = vpack.c.b16 %v1548, %v1544
    %v1733 = vpack.c.b16 %v1549, %v1545
    %v1734 = vpack.c.b16 %v1554, %v1550
    %v1735 = vpack.c.b16 %v1555, %v1551
    %v1736 = vpack.c.b16 %v1556, %v1552
    %v1737 = vpack.c.b16 %v1557, %v1553
    %v1738 = vpack.c.b16 %v1562, %v1558
    %v1739 = vpack.c.b16 %v1563, %v1559
    %v1740 = vpack.c.b16 %v1564, %v1560
    %v1741 = vpack.c.b16 %v1565, %v1561
    %v1742 = vpack.c.b16 %v1570, %v1566
    %v1743 = vpack.c.b16 %v1571, %v1567
    %v1744 = vpack.c.b16 %v1572, %v1568
    %v1745 = vpack.c.b16 %v1573, %v1569
    %v1746 = vpack.c.b16 %v1578, %v1574
    %v1747 = vpack.c.b16 %v1579, %v1575
    %v1748 = vpack.c.b16 %v1580, %v1576
    %v1749 = vpack.c.b16 %v1581, %v1577
    %v1750 = vpack.c.b16 %v1586, %v1582
    %v1751 = vpack.c.b16 %v1587, %v1583
    %v1752 = vpack.c.b16 %v1588, %v1584
    %v1753 = vpack.c.b16 %v1589, %v1585
    %v1754 = vpack.c.b16 %v1594, %v1590
    %v1755 = vpack.c.b16 %v1595, %v1591
    %v1756 = vpack.c.b16 %v1596, %v1592
    %v1757 = vpack.c.b16 %v1597, %v1593
    %v1758 = vpack.c.b16 %v1602, %v1598
    %v1759 = vpack.c.b16 %v1603, %v1599
    %v1760 = vpack.c.b16 %v1604, %v1600
    %v1761 = vpack.c.b16 %v1605, %v1601
    %v1762 = vpack.c.b16 %v1610, %v1606
    %v1763 = vpack.c.b16 %v1611, %v1607
    %v1764 = vpack.c.b16 %v1612, %v1608
    %v1765 = vpack.c.b16 %v1613, %v1609
    %v1766 = vpack.c.b16 %v1618, %v1614
    %v1767 = vpack.c.b16 %v1619, %v1615
    %v1768 = vpack.c.b16 %v1620, %v1616
    %v1769 = vpack.c.b16 %v1621, %v1617
    %v1770 = vpack.c.b16 %v1626, %v1622
    %v1771 = vpack.c.b16 %v1627, %v1623
    %v1772 = vpack.c.b16 %v1628, %v1624
    %v1773 = vpack.c.b16 %v1629, %v1625
    %v1774 = vpack.c.b16 %v1634, %v1630
    %v1775 = vpack.c.b16 %v1635, %v1631
    %v1776 = vpack.c.b16 %v1636, %v1632
    %v1777 = vpack.c.b16 %v1637, %v1633
    %v1778 = vpack.c.b16 %v1642, %v1638
    %v1779 = vpack.c.b16 %v1643, %v1639
    %v1780 = vpack.c.b16 %v1644, %v1640
    %v1781 = vpack.c.b16 %v1645, %v1641
    %v1782 = vpack.c.b16 %v1650, %v1646
    %v1783 = vpack.c.b16 %v1651, %v1647
    %v1784 = vpack.c.b16 %v1652, %v1648
    %v1785 = vpack.c.b16 %v1653, %v1649
    %v1786 = vpack.c.b16 %v1658, %v1654
    %v1787 = vpack.c.b16 %v1659, %v1655
    %v1788 = vpack.c.b16 %v1660, %v1656
    %v1789 = vpack.c.b16 %v1661, %v1657
    %1918 = vmatprep.subr.bf16.mxu0 %v1663
    %1919 = vmatpush1.bf16.msra.mxu0 %v1662
    %1920 = vmatprep.subr.bf16.mxu0 %v1667
    %1921 = vmatpush1.bf16.msra.mxu0 %v1666
    %1922 = vmatprep.subr.bf16.mxu0 %v1671
    %1923 = vmatpush1.bf16.msra.mxu0 %v1670
    %1924 = vmatprep.subr.bf16.mxu0 %v1675
    %1925 = vmatpush1.bf16.msra.mxu0 %v1674
    %1926 = vmatprep.subr.bf16.mxu0 %v1679
    %1927 = vmatpush1.bf16.msra.mxu0 %v1678
    %1928 = vmatprep.subr.bf16.mxu0 %v1683
    %1929 = vmatpush1.bf16.msra.mxu0 %v1682
    %1930 = vmatprep.subr.bf16.mxu0 %v1687
    %1931 = vmatpush1.bf16.msra.mxu0 %v1686
    %1932 = vmatprep.subr.bf16.mxu0 %v1691
    %1933 = vmatpush1.bf16.msra.mxu0 %v1690
    %1934 = vmatprep.subr.bf16.mxu0 %v1695
    %1935 = vmatpush1.bf16.msra.mxu0 %v1694
    %1936 = vmatprep.subr.bf16.mxu0 %v1699
    %1937 = vmatpush1.bf16.msra.mxu0 %v1698
    %1938 = vmatprep.subr.bf16.mxu0 %v1703
    %1939 = vmatpush1.bf16.msra.mxu0 %v1702
    %1940 = vmatprep.subr.bf16.mxu0 %v1707
    %1941 = vmatpush1.bf16.msra.mxu0 %v1706
    %1942 = vmatprep.subr.bf16.mxu0 %v1711
    %1943 = vmatpush1.bf16.msra.mxu0 %v1710
    %1944 = vmatprep.subr.bf16.mxu0 %v1715
    %1945 = vmatpush1.bf16.msra.mxu0 %v1714
    %1946 = vmatprep.subr.bf16.mxu0 %v1719
    %1947 = vmatpush1.bf16.msra.mxu0 %v1718
    %1948 = vmatprep.subr.bf16.mxu0 %v1723
    %1949 = vmatpush1.bf16.msra.mxu0 %v1722
    %1950 = vmatprep.mubr.bf16.mxu0 %v1125
    %1951 = vmatmul.mubr.bf16.gmra.mrb[0].mxu0 %v1124
    %v1952 = vpop.f32.mrb[0].mxu0
    %v1953 = vadd.f32 %v1261, %v1952
    %v1954 = vpop.f32.mrb[0].mxu0
    %v1955 = vadd.f32 %v1265, %v1954
    %v1956 = vpop.f32.mrb[0].mxu0
    %v1957 = vadd.f32 %v1261, %v1956
    %v1958 = vpop.f32.mrb[0].mxu0
    %v1959 = vadd.f32 %v1265, %v1958
    %1960 = vdwg.mxu0
    %1961 = vmatprep.subr.bf16.mxu0 %v1727
    %1962 = vmatpush1.bf16.msra.mxu0 %v1726
    %1963 = vmatprep.subr.bf16.mxu0 %v1731
    %1964 = vmatpush1.bf16.msra.mxu0 %v1730
    %1965 = vmatprep.subr.bf16.mxu0 %v1735
    %1966 = vmatpush1.bf16.msra.mxu0 %v1734
    %1967 = vmatprep.subr.bf16.mxu0 %v1739
    %1968 = vmatpush1.bf16.msra.mxu0 %v1738
    %1969 = vmatprep.subr.bf16.mxu0 %v1743
    %1970 = vmatpush1.bf16.msra.mxu0 %v1742
    %1971 = vmatprep.subr.bf16.mxu0 %v1747
    %1972 = vmatpush1.bf16.msra.mxu0 %v1746
    %1973 = vmatprep.subr.bf16.mxu0 %v1751
    %1974 = vmatpush1.bf16.msra.mxu0 %v1750
    %1975 = vmatprep.subr.bf16.mxu0 %v1755
    %1976 = vmatpush1.bf16.msra.mxu0 %v1754
    %1977 = vmatprep.subr.bf16.mxu0 %v1759
    %1978 = vmatpush1.bf16.msra.mxu0 %v1758
    %1979 = vmatprep.subr.bf16.mxu0 %v1763
    %1980 = vmatpush1.bf16.msra.mxu0 %v1762
    %1981 = vmatprep.subr.bf16.mxu0 %v1767
    %1982 = vmatpush1.bf16.msra.mxu0 %v1766
    %1983 = vmatprep.subr.bf16.mxu0 %v1771
    %1984 = vmatpush1.bf16.msra.mxu0 %v1770
    %1985 = vmatprep.subr.bf16.mxu0 %v1775
    %1986 = vmatpush1.bf16.msra.mxu0 %v1774
    %1987 = vmatprep.subr.bf16.mxu0 %v1779
    %1988 = vmatpush1.bf16.msra.mxu0 %v1778
    %1989 = vmatprep.subr.bf16.mxu0 %v1783
    %1990 = vmatpush1.bf16.msra.mxu0 %v1782
    %1991 = vmatprep.subr.bf16.mxu0 %v1787
    %1992 = vmatpush1.bf16.msra.mxu0 %v1786
    %1993 = vmatprep.mubr.bf16.mxu0 %v1127
    %1994 = vmatmul.mubr.bf16.gmra.mrb[0].mxu0 %v1126
    %v1995 = vpop.f32.mrb[0].mxu0
    %v1996 = vadd.f32 %v1953, %v1995
    %v1997 = vpop.f32.mrb[0].mxu0
    %v1998 = vadd.f32 %v1955, %v1997
    %v1999 = vpop.f32.mrb[0].mxu0
    %v2000 = vadd.f32 %v1957, %v1999
    %v2001 = vpop.f32.mrb[0].mxu0
    %v2002 = vadd.f32 %v1959, %v2001
    %2003 = vdwg.mxu0
    %2004 = vmatprep.subr.bf16.mxu0 %v1665
    %2005 = vmatpush1.bf16.msra.mxu0 %v1664
    %2006 = vmatprep.subr.bf16.mxu0 %v1669
    %2007 = vmatpush1.bf16.msra.mxu0 %v1668
    %2008 = vmatprep.subr.bf16.mxu0 %v1673
    %2009 = vmatpush1.bf16.msra.mxu0 %v1672
    %2010 = vmatprep.subr.bf16.mxu0 %v1677
    %2011 = vmatpush1.bf16.msra.mxu0 %v1676
    %2012 = vmatprep.subr.bf16.mxu0 %v1681
    %2013 = vmatpush1.bf16.msra.mxu0 %v1680
    %2014 = vmatprep.subr.bf16.mxu0 %v1685
    %2015 = vmatpush1.bf16.msra.mxu0 %v1684
    %2016 = vmatprep.subr.bf16.mxu0 %v1689
    %2017 = vmatpush1.bf16.msra.mxu0 %v1688
    %2018 = vmatprep.subr.bf16.mxu0 %v1693
    %2019 = vmatpush1.bf16.msra.mxu0 %v1692
    %2020 = vmatprep.subr.bf16.mxu0 %v1697
    %2021 = vmatpush1.bf16.msra.mxu0 %v1696
    %2022 = vmatprep.subr.bf16.mxu0 %v1701
    %2023 = vmatpush1.bf16.msra.mxu0 %v1700
    %2024 = vmatprep.subr.bf16.mxu0 %v1705
    %2025 = vmatpush1.bf16.msra.mxu0 %v1704
    %2026 = vmatprep.subr.bf16.mxu0 %v1709
    %2027 = vmatpush1.bf16.msra.mxu0 %v1708
    %2028 = vmatprep.subr.bf16.mxu0 %v1713
    %2029 = vmatpush1.bf16.msra.mxu0 %v1712
    %2030 = vmatprep.subr.bf16.mxu0 %v1717
    %2031 = vmatpush1.bf16.msra.mxu0 %v1716
    %2032 = vmatprep.subr.bf16.mxu0 %v1721
    %2033 = vmatpush1.bf16.msra.mxu0 %v1720
    %2034 = vmatprep.subr.bf16.mxu0 %v1725
    %2035 = vmatpush1.bf16.msra.mxu0 %v1724
    %2036 = vmatprep.mubr.bf16.mxu0 %v1125
    %2037 = vmatmul.mubr.bf16.gmra.mrb[0].mxu0 %v1124
    %v2038 = vpop.f32.mrb[0].mxu0
    %v2039 = vadd.f32 %v1269, %v2038
    %v2040 = vpop.f32.mrb[0].mxu0
    %v2041 = vadd.f32 %v1273, %v2040
    %v2042 = vpop.f32.mrb[0].mxu0
    %v2043 = vadd.f32 %v1269, %v2042
    %v2044 = vpop.f32.mrb[0].mxu0
    %v2045 = vadd.f32 %v1273, %v2044
    %2046 = vdwg.mxu0
    %2047 = vmatprep.subr.bf16.mxu0 %v1729
    %2048 = vmatpush1.bf16.msra.mxu0 %v1728
    %2049 = vmatprep.subr.bf16.mxu0 %v1733
    %2050 = vmatpush1.bf16.msra.mxu0 %v1732
    %2051 = vmatprep.subr.bf16.mxu0 %v1737
    %2052 = vmatpush1.bf16.msra.mxu0 %v1736
    %2053 = vmatprep.subr.bf16.mxu0 %v1741
    %2054 = vmatpush1.bf16.msra.mxu0 %v1740
    %2055 = vmatprep.subr.bf16.mxu0 %v1745
    %2056 = vmatpush1.bf16.msra.mxu0 %v1744
    %2057 = vmatprep.subr.bf16.mxu0 %v1749
    %2058 = vmatpush1.bf16.msra.mxu0 %v1748
    %2059 = vmatprep.subr.bf16.mxu0 %v1753
    %2060 = vmatpush1.bf16.msra.mxu0 %v1752
    %2061 = vmatprep.subr.bf16.mxu0 %v1757
    %2062 = vmatpush1.bf16.msra.mxu0 %v1756
    %2063 = vmatprep.subr.bf16.mxu0 %v1761
    %2064 = vmatpush1.bf16.msra.mxu0 %v1760
    %2065 = vmatprep.subr.bf16.mxu0 %v1765
    %2066 = vmatpush1.bf16.msra.mxu0 %v1764
    %2067 = vmatprep.subr.bf16.mxu0 %v1769
    %2068 = vmatpush1.bf16.msra.mxu0 %v1768
    %2069 = vmatprep.subr.bf16.mxu0 %v1773
    %2070 = vmatpush1.bf16.msra.mxu0 %v1772
    %2071 = vmatprep.subr.bf16.mxu0 %v1777
    %2072 = vmatpush1.bf16.msra.mxu0 %v1776
    %2073 = vmatprep.subr.bf16.mxu0 %v1781
    %2074 = vmatpush1.bf16.msra.mxu0 %v1780
    %2075 = vmatprep.subr.bf16.mxu0 %v1785
    %2076 = vmatpush1.bf16.msra.mxu0 %v1784
    %2077 = vmatprep.subr.bf16.mxu0 %v1789
    %2078 = vmatpush1.bf16.msra.mxu0 %v1788
    %2079 = vmatprep.mubr.bf16.mxu0 %v1127
    %2080 = vmatmul.mubr.bf16.gmra.mrb[0].mxu0 %v1126
    %v2081 = vpop.f32.mrb[0].mxu0
    %v2082 = vadd.f32 %v2039, %v2081
    %v2083 = vpop.f32.mrb[0].mxu0
    %v2084 = vadd.f32 %v2041, %v2083
    %v2085 = vpop.f32.mrb[0].mxu0
    %v2086 = vadd.f32 %v2043, %v2085
    %v2087 = vpop.f32.mrb[0].mxu0
    %v2088 = vadd.f32 %v2045, %v2087
    %2089 = vdwg.mxu0
    %2090 = vst [vmem:[%s7] sm:$0xff] %v1996
    %2091 = vst [vmem:[%s7 + $0x8] sm:$0xff] %v1998
    %2092 = vst [vmem:[%s7 + $0x10] sm:$0xff] %v2082
    %2093 = vst [vmem:[%s7 + $0x18] sm:$0xff] %v2084
    %2094 = vst [vmem:[%s7 + $0x20] sm:$0xff] %v2000
    %2095 = vst [vmem:[%s7 + $0x28] sm:$0xff] %v2002
    %2096 = vst [vmem:[%s7 + $0x30] sm:$0xff] %v2086
    %2097 = vst [vmem:[%s7 + $0x38] sm:$0xff] %v2088
    // Predicated region
    $region42: #{decoder_forward.1} parent=1 // pred_check
      _
    $region43: #{decoder_forward.1} parent=1 // pred_check_branch
      %2099 = sbr.rel (0) target = $region45
    $region44: #{decoder_forward.1} parent=1 // pred_region
      _
    $region45: #{decoder_forward.1} parent=1 // pred_fallthru
      _
    // Predicated region
    $region46: #{decoder_forward.1} parent=1 // pred_check
      _
    $region47: #{decoder_forward.1} parent=1 // pred_check_branch
      %2101 = sbr.rel (0) target = $region49
    $region48: #{decoder_forward.1} parent=1 // pred_region
      _
    $region49: #{decoder_forward.1} parent=1 // pred_fallthru
      _
    %2102 = vsyncpa [#allocation3], 1
    %2103 = vsyncpa [#allocation5], 1

</llo_original>
